<compile_context>
chip_gen: v7x
topology: tpu7x:2x2x1
jax: 0.10.0
libtpu: 0.0.40
codegen_flags: <defaults>
</compile_context>

<pallas_src>
import math

import jax
import jax.numpy as jnp
from jax import lax
from jax.experimental import pallas as pl
from jax.experimental.pallas import tpu as pltpu


def embed_posenc_kernel(x_ref, w_ref, add_ref, o_ref):
    # x_ref  : (tb, Pp, F)   zero rows already inserted for token / tail positions
    # w_ref  : (F, dn)       resident (single-buffered) weight slab
    # add_ref: (Pp, dn) f32  combined additive table (token+PE / bias+PE / 0)
    # o_ref  : (tb, Pp, dn)  final output slab
    tb, Pp, F = x_ref.shape
    dn = w_ref.shape[1]

    # Collapse (tb, Pp) -> one big MXU M dimension.  Pp % 8 == 0 is guaranteed
    # by the wrapper, so this reshape is a pure sublane relabel (no copy).
    x2 = x_ref[...].reshape(tb * Pp, F)
    y = jnp.dot(
        x2,
        w_ref[...],
        preferred_element_type=jnp.float32,
        precision=lax.Precision.HIGHEST,  # match f32 reference / PyTorch Linear
    )
    y = y.reshape(tb, Pp, dn) + add_ref[...][None, :, :]  # f32 epilogue

    # Single aligned, lane-dense, unmasked full-tile store.
    o_ref[...] = y.astype(o_ref.dtype)


def make_pe_table(d_model, length):
    """First `length` rows of the sinusoidal PE table (f32). Odd d_model safe."""
    position = jnp.arange(length, dtype=jnp.float32)[:, None]
    div_term = jnp.exp(
        jnp.arange(0, d_model, 2, dtype=jnp.float32) * (-math.log(10000.0) / d_model)
    )
    args = position * div_term                       # (length, ceil(D/2))
    pe = jnp.zeros((length, d_model), dtype=jnp.float32)
    pe = pe.at[:, 0::2].set(jnp.sin(args))
    pe = pe.at[:, 1::2].set(jnp.cos(args)[:, : d_model // 2])
    return pe


def _vmem_budget_bytes():
    """Generation-aware VMEM budget: 75% of physical capacity (96 MiB on
    v5e/v6e, 48 MiB on v7x), conservative 48 MiB fallback if unqueryable."""
    cap = 64 * 1024 * 1024
    try:
        info = pltpu.get_tpu_info()
        cap = int(getattr(info, "vmem_capacity_bytes", cap) or cap)
    except Exception:
        pass
    return (cap * 3) // 4


def _pick_d_tile(D, F, Pp, budget):
    """Largest dn (== D, or a multiple of 128 dividing D) whose single-buffered
    residents (f32 weight slab + add table) use at most half the budget."""
    resident = lambda dn: 4 * (F + Pp) * dn
    if D % 128 != 0 or resident(D) * 2 <= budget:
        return D
    cands = [dn for dn in range(128, D + 1, 128) if D % dn == 0]
    for dn in reversed(cands):
        if resident(dn) * 2 <= budget:
            return dn
    return cands[0]  # 128: lane-dense minimum


def _pick_batch_tile(B, Pp, F, dn, budget):
    """Largest divisor of B whose per-step footprint (double-buffered x/out,
    f32 y temporary, reshape copy) plus residents fits the budget; capped at
    B//2 so 2-TC chips (v7x) always get >= 2 parallel grid steps."""
    resident = 4 * (F + Pp) * dn          # single-buffered residents (f32)
    avail = budget - resident
    tb_cap = B if B == 1 else max(1, B // 2)
    best = 1
    for tb in range(1, tb_cap + 1):
        if B % tb:
            continue
        per_step = 4 * (
            2 * tb * Pp * F        # x tile, double-buffered
            + 2 * tb * Pp * dn     # out tile, double-buffered
            + tb * Pp * dn         # f32 y temporary
            + tb * Pp * F          # (tb*Pp, F) collapse copy (conservative)
        )
        if per_step > avail:
            break
        best = tb
    return best


def embed_posenc(x, token, w, bias, max_len=5000):
    """Forward of EmbedPosEnc (eval mode: Dropout is identity).

    x     : (B, S, F)
    token : (1, s_tok, D)
    w     : (F, D)     (== PyTorch nn.Linear weight.T)
    bias  : (D,)
    returns (B, s_tok + S, D)
    """
    B, S, F = x.shape
    D = w.shape[1]
    s_tok = token.shape[1]
    P = s_tok + S
    assert P <= max_len

    Pp = ((P + 7) // 8) * 8  # pad positions to a sublane multiple

    # Combined additive table: rows [0,s_tok) = token + PE, rows [s_tok,P) =
    # bias + PE, rows [P,Pp) zero (sliced off below).  Bias/token folded here
    # so the kernel is matmul + one fused add with a single aligned store.
    pe = make_pe_table(D, P)                                        # (P, D) f32
    add = jnp.zeros((Pp, D), dtype=jnp.float32)
    add = add.at[:s_tok].set(token[0].astype(jnp.float32) + pe[:s_tok])
    add = add.at[s_tok:P].set(bias.astype(jnp.float32)[None, :] + pe[s_tok:])

    # Prepend s_tok zero rows (and Pp-P tail rows) to x: the matmul then yields
    # 0 at token/tail positions and the add table supplies their values.
    x_pad = jnp.pad(x, ((0, 0), (s_tok, Pp - P), (0, 0)))           # (B, Pp, F)

    budget = _vmem_budget_bytes()
    dn = _pick_d_tile(D, F, Pp, budget)
    tb = _pick_batch_tile(B, Pp, F, dn, budget)
    nb, nd = B // tb, D // dn

    # Guard kept next to the kernel call: the in-kernel (tb,Pp,F)->(tb*Pp,F)
    # collapse is only layout-free because Pp is a multiple of 8.
    assert Pp % 8 == 0 and B % tb == 0 and D % dn == 0

    resident = pl.Buffered(1)  # constant-index residents: no double-buffering

    out_pad = pl.pallas_call(
        embed_posenc_kernel,
        out_shape=jax.ShapeDtypeStruct((B, Pp, D), x.dtype),
        grid_spec=pltpu.PrefetchScalarGridSpec(
            num_scalar_prefetch=0,
            grid=(nb, nd),
            in_specs=[
                pl.BlockSpec((tb, Pp, F), lambda i, j: (i, 0, 0)),   # x tile
                pl.BlockSpec((F, dn), lambda i, j: (0, j),           # weight slab
                             pipeline_mode=resident),
                pl.BlockSpec((Pp, dn), lambda i, j: (0, j),          # add table
                             pipeline_mode=resident),
            ],
            out_specs=pl.BlockSpec((tb, Pp, dn), lambda i, j: (i, 0, j)),
        ),
        compiler_params=pltpu.CompilerParams(
            dimension_semantics=("parallel", "parallel"),
            vmem_limit_bytes=budget,
        ),
    )(x_pad, w, add)

    return out_pad[:, :P, :]


def embed_posenc_reference(x, token, w, bias):
    B, S, F = x.shape
    D = w.shape[1]
    s_tok = token.shape[1]
    y = jnp.einsum("bsf,fd->bsd", x, w,
                   precision=lax.Precision.HIGHEST) + bias[None, None, :]
    tok = jnp.broadcast_to(token, (B, s_tok, D))
    cat = jnp.concatenate([tok, y], axis=1)                         # (B, P, D)
    pe = make_pe_table(D, s_tok + S)
    return cat + pe[None, :, :]


if __name__ == "__main__":
    # Small but TPU-friendly shapes: lane-dense d_model (128), seq=32, batch=16
    # -> tb=8, a 2-step "parallel" grid (both TensorCores busy on v7x).
    B, S, F, D = 16, 32, 16, 128
    s_tok = 1

    key = jax.random.PRNGKey(0)
    kx, ktok, kw, kb = jax.random.split(key, 4)

    x = jax.random.normal(kx, (B, S, F), dtype=jnp.float32)
    token = jax.random.normal(ktok, (1, s_tok, D), dtype=jnp.float32)
    # Deterministic "Linear(input_size, d_model)" parameters (synthetic init)
    bound = 1.0 / math.sqrt(F)
    w = jax.random.uniform(kw, (F, D), minval=-bound, maxval=bound, dtype=jnp.float32)
    bias = jax.random.uniform(kb, (D,), minval=-bound, maxval=bound, dtype=jnp.float32)

    out = jax.block_until_ready(embed_posenc(x, token, w, bias))
    ref = embed_posenc_reference(x, token, w, bias)

    assert out.shape == (B, s_tok + S, D)
    assert jnp.allclose(out, ref, atol=1e-4, rtol=1e-4), "mismatch vs reference"

    print("KERNEL_OK")
</pallas_src>

<mosaic_0001>
module attributes {stable_mosaic.version = 11 : i64} {
  func.func @embed_posenc_kernel(%arg0: i32, %arg1: i32, %arg2: memref<8x40x16xf32, #tpu.memory_space<vmem>>, %arg3: memref<16x128xf32, #tpu.memory_space<vmem>>, %arg4: memref<40x128xf32, #tpu.memory_space<vmem>>, %arg5: memref<8x40x128xf32, #tpu.memory_space<vmem>>) attributes {dimension_semantics = [#tpu.dimension_semantics<parallel>, #tpu.dimension_semantics<parallel>], iteration_bounds = array<i64: 2, 1>, scalar_prefetch = 0 : i64, scratch_operands = 0 : i64, tpu.core_type = #tpu.core_type<tc>, window_params = [{transform_indices = @transform_0, window_bounds = array<i64: 8, 40, 16>}, {pipeline_mode = #tpu.pipeline_mode<synchronous>, transform_indices = @transform_1, window_bounds = array<i64: 16, 128>}, {pipeline_mode = #tpu.pipeline_mode<synchronous>, transform_indices = @transform_2, window_bounds = array<i64: 40, 128>}, {transform_indices = @transform_3, window_bounds = array<i64: 8, 40, 128>}]} {
    %c0 = arith.constant 0 : index
    %c0_0 = arith.constant 0 : index
    %c0_1 = arith.constant 0 : index
    %0 = vector.load %arg2[%c0, %c0_0, %c0_1] : memref<8x40x16xf32, #tpu.memory_space<vmem>>, vector<8x40x16xf32>
    %1 = vector.shape_cast %0 : vector<8x40x16xf32> to vector<320x16xf32>
    %c0_2 = arith.constant 0 : index
    %c0_3 = arith.constant 0 : index
    %2 = vector.load %arg3[%c0_2, %c0_3] : memref<16x128xf32, #tpu.memory_space<vmem>>, vector<16x128xf32>
    %cst = arith.constant dense<0.000000e+00> : vector<320x128xf32>
    %3 = tpu.matmul %1, %2, %cst {dimension_numbers = #tpu.dot_dimension_numbers<[1], [0], [0], [1], [0, 0, 1, 1], [], []>, precision = #tpu.contract_precision<fp32>} : vector<320x16xf32>, vector<16x128xf32>, vector<320x128xf32> -> vector<320x128xf32>
    %4 = vector.shape_cast %3 : vector<320x128xf32> to vector<8x40x128xf32>
    %c0_4 = arith.constant 0 : index
    %c0_5 = arith.constant 0 : index
    %5 = vector.load %arg4[%c0_4, %c0_5] : memref<40x128xf32, #tpu.memory_space<vmem>>, vector<40x128xf32>
    %6 = vector.shape_cast %5 : vector<40x128xf32> to vector<1x40x128xf32>
    %7 = vector.broadcast %6 : vector<1x40x128xf32> to vector<8x40x128xf32>
    %8 = arith.addf %4, %7 : vector<8x40x128xf32>
    %c0_6 = arith.constant 0 : index
    %c0_7 = arith.constant 0 : index
    %c0_8 = arith.constant 0 : index
    %9 = vector.load %arg5[%c0_6, %c0_7, %c0_8] : memref<8x40x128xf32, #tpu.memory_space<vmem>>, vector<8x40x128xf32>
    tpu.vector_store %arg5[%c0_6, %c0_7, %c0_8], %8 {strides = array<i32>} : memref<8x40x128xf32, #tpu.memory_space<vmem>>, vector<8x40x128xf32>,
    return
  }
  func.func @transform_0(%arg0: i32, %arg1: i32) -> (i32, i32, i32) {
    %c0_i32 = arith.constant 0 : i32
    %c0_i32_0 = arith.constant 0 : i32
    %c0_i32_1 = arith.constant 0 : i32
    return %arg0, %c0_i32, %c0_i32_0 : i32, i32, i32
  }
  func.func @transform_1(%arg0: i32, %arg1: i32) -> (i32, i32) {
    %c0_i32 = arith.constant 0 : i32
    %c0_i32_0 = arith.constant 0 : i32
    return %c0_i32, %arg1 : i32, i32
  }
  func.func @transform_2(%arg0: i32, %arg1: i32) -> (i32, i32) {
    %c0_i32 = arith.constant 0 : i32
    %c0_i32_0 = arith.constant 0 : i32
    return %c0_i32, %arg1 : i32, i32
  }
  func.func @transform_3(%arg0: i32, %arg1: i32) -> (i32, i32, i32) {
    %c0_i32 = arith.constant 0 : i32
    %c0_i32_0 = arith.constant 0 : i32
    return %arg0, %c0_i32, %arg1 : i32, i32, i32
  }
}

</mosaic_0001>

<llo_original>
// kernel: tpu_custom_call.1
$region0: #{tpu_custom_call.1}
  #allocation0 [shape = 'u32[]', space=smem, size = 0x4, offset = 0x4, fixed_abs, tag = 'smem constant byte address 0x4 - core index']
  #allocation1 [shape = 'u32[144,128]{1,0:T(1,128)}', space=vmem, size = 0x12000, scoped, tag = 'internal scratch']
  %s0 = inlined_call_operand.vmem [shape: f32[16,40,16], index: 0, kind: input, shape index: {}]
  %s1 = inlined_call_operand.vmem [shape: f32[16,128], index: 1, kind: input, shape index: {}]
  %s2 = inlined_call_operand.vmem [shape: f32[40,128], index: 2, kind: input, shape index: {}]
  %s3 = inlined_call_operand.hbm [shape: f32[16,40,128], index: 3, kind: output, shape index: {}]
  %s4 = sld [smem:[#allocation0]]
  $region45: #{tpu_custom_call.1} parent=0
    _
  %s6 = ssub.s32 1, %s4
  %s7 = scalar_select 0, %s6, %s4
  $region1: #{tpu_custom_call.1} parent=0
    #allocation2 [shape = 'u8[327680]{0}', space=vmem, size = 0x50000, scoped, tag = 'output window, operand 0']
    #allocation3 [shape = 's32[2]{0}', space=sflag, size = 0x8, scoped, tag = 'scoped memory for tpu_custom_call.1']
    %8 = vsyncpa [#allocation3], 0
    %s9 = scalar_lea.sflag [#allocation3], 1
    %10 = vsyncpa %s9, 0
    loop: start=0, step=1, limit=4
    $region2: #{tpu_custom_call.1} parent=1 // loop_pre_header
      _
    $region3: #{tpu_custom_call.1} parent=1 // loop_header
      %s12 = sphi 0, %s16
      %p13 = scmp.ge.s32.totalorder %s12, 4
      %s19 = sphi 0, %s31
      %s20 = sphi 0, %s27
      %s21 = sphi 0, %s19
      %s22 = sphi 0, %s20
      %s23 = sphi 0, %s21
      %s24 = sphi 0, %s22
      %s34 = sphi 0, %s36
      %s37 = sphi 0, %s34
      %s38 = sphi 0, %s37
      %s54 = sphi 0, %s38
      %s60 = sphi 0, %s62
      %s63 = sphi 0, %s60
      %s64 = sphi 0, %s63
      %s80 = sphi 0, %s64
      %s86 = sphi 0, %s88
      %s89 = sphi 0, %s86
      %s90 = sphi 0, %s89
      %s106 = sphi 0, %s90
      %s114 = sphi 0, %s116
      %s117 = sphi 0, %s114
      %s118 = sphi 0, %s117
      %s134 = sphi 0, %s118
    $region4: #{tpu_custom_call.1} parent=1 // loop_header_branch
      %15 = sbr.rel (%p13) target = $region8
    $region5: #{tpu_custom_call.1} parent=1 // loop_body
      %s17 = ssub.s32 %s12, 1
      %s18 = ssub.s32 %s12, 2
      %s25 = sadd.s32 1, %s20
      %p26 = scmp.ge.s32.totalorder %s25, 1
      %s27 = scalar_select %p26, 0, %s25
      %s28 = sadd.s32 1, %s19
      %s29 = scalar_select %p26, %s28, %s19
      %p30 = scmp.ge.s32.totalorder %s29, 2
      %s31 = scalar_select %p30, 0, %s29
      %s32 = ssub.s32 %s19, %s31
      %p33 = scmp.eq.s32.totalorder %s32, 0
      %s35 = sadd.s32 %s34, 1
      %s36 = scalar_select %p33, %s34, %s35
      %p39 = pneg %p33
      %p40 = scmp.eq.s32.totalorder %s12, 1
      %p41 = por %p39, %p40
      %p42 = scmp.ne.s32.totalorder %s34, %s37
      %p43 = scmp.eq.s32.totalorder %s12, 0
      %p44 = por %p42, %p43
      %p45 = scmp.ne.s32.totalorder %s34, %s37
      %p46 = scmp.eq.s32.totalorder %s17, 1
      %p47 = por %p45, %p46
      %p48 = scmp.ne.s32.totalorder %s37, %s38
      %p49 = scmp.eq.s32.totalorder %s17, 0
      %p50 = por %p48, %p49
      %p51 = scmp.ne.s32.totalorder %s37, %s38
      %p52 = scmp.eq.s32.totalorder %s18, 1
      %p53 = por %p51, %p52
      %p55 = scmp.ne.s32.totalorder %s38, %s54
      %p56 = scmp.eq.s32.totalorder %s18, 0
      %p57 = por %p55, %p56
      %s58 = ssub.s32 %s20, %s27
      %p59 = scmp.eq.s32.totalorder %s58, 0
      %s61 = sadd.s32 %s60, 1
      %s62 = scalar_select %p59, %s60, %s61
      %p65 = pneg %p59
      %p66 = scmp.eq.s32.totalorder %s12, 1
      %p67 = por %p65, %p66
      %p68 = scmp.ne.s32.totalorder %s60, %s63
      %p69 = scmp.eq.s32.totalorder %s12, 0
      %p70 = por %p68, %p69
      %p71 = scmp.ne.s32.totalorder %s60, %s63
      %p72 = scmp.eq.s32.totalorder %s17, 1
      %p73 = por %p71, %p72
      %p74 = scmp.ne.s32.totalorder %s63, %s64
      %p75 = scmp.eq.s32.totalorder %s17, 0
      %p76 = por %p74, %p75
      %p77 = scmp.ne.s32.totalorder %s63, %s64
      %p78 = scmp.eq.s32.totalorder %s18, 1
      %p79 = por %p77, %p78
      %p81 = scmp.ne.s32.totalorder %s64, %s80
      %p82 = scmp.eq.s32.totalorder %s18, 0
      %p83 = por %p81, %p82
      %s84 = ssub.s32 %s20, %s27
      %p85 = scmp.eq.s32.totalorder %s84, 0
      %s87 = sadd.s32 %s86, 1
      %s88 = scalar_select %p85, %s86, %s87
      %p91 = pneg %p85
      %p92 = scmp.eq.s32.totalorder %s12, 1
      %p93 = por %p91, %p92
      %p94 = scmp.ne.s32.totalorder %s86, %s89
      %p95 = scmp.eq.s32.totalorder %s12, 0
      %p96 = por %p94, %p95
      %p97 = scmp.ne.s32.totalorder %s86, %s89
      %p98 = scmp.eq.s32.totalorder %s17, 1
      %p99 = por %p97, %p98
      %p100 = scmp.ne.s32.totalorder %s89, %s90
      %p101 = scmp.eq.s32.totalorder %s17, 0
      %p102 = por %p100, %p101
      %p103 = scmp.ne.s32.totalorder %s89, %s90
      %p104 = scmp.eq.s32.totalorder %s18, 1
      %p105 = por %p103, %p104
      %p107 = scmp.ne.s32.totalorder %s90, %s106
      %p108 = scmp.eq.s32.totalorder %s18, 0
      %p109 = por %p107, %p108
      %s110 = ssub.s32 %s19, %s31
      %s111 = ssub.s32 %s20, %s27
      %s112 = sor.u32 %s110, %s111
      %p113 = scmp.eq.s32.totalorder %s112, 0
      %s115 = sadd.s32 %s114, 1
      %s116 = scalar_select %p113, %s114, %s115
      %p119 = pneg %p113
      %p120 = scmp.eq.s32.totalorder %s12, 1
      %p121 = por %p119, %p120
      %p122 = scmp.ne.s32.totalorder %s114, %s117
      %p123 = scmp.eq.s32.totalorder %s12, 0
      %p124 = por %p122, %p123
      %p125 = scmp.ne.s32.totalorder %s114, %s117
      %p126 = scmp.eq.s32.totalorder %s17, 1
      %p127 = por %p125, %p126
      %p128 = scmp.ne.s32.totalorder %s117, %s118
      %p129 = scmp.eq.s32.totalorder %s17, 0
      %p130 = por %p128, %p129
      %p131 = scmp.ne.s32.totalorder %s117, %s118
      %p132 = scmp.eq.s32.totalorder %s18, 1
      %p133 = por %p131, %p132
      %p135 = scmp.ne.s32.totalorder %s118, %s134
      %p136 = scmp.eq.s32.totalorder %s18, 0
      %p137 = por %p135, %p136
      %p138 = scmp.le.s32.totalorder 1, %s12
      %p139 = scmp.lt.s32.totalorder %s12, 3
      %p140 = pnand %p138, %p139
      %p141 = pneg %p140
      // Predicated region
      $region9: #{tpu_custom_call.1} parent=5 // pred_check
        _
      $region10: #{tpu_custom_call.1} parent=5 // pred_check_branch
        %143 = sbr.rel (%p140) target = $region12
      $region11: #{tpu_custom_call.1} parent=5 // pred_region
        %s144 = ssub.s32 %s12, 1
        // Predicated region
        $region13: #{tpu_custom_call.1} parent=11 // pred_check
          %p145 = pneg %p76
        $region14: #{tpu_custom_call.1} parent=11 // pred_check_branch
          %147 = sbr.rel (%p145) target = $region16
        $region15: #{tpu_custom_call.1} parent=11 // pred_region
          %p148 = scmp.lt.s32.totalorder %s22, 0
          %s149 = scalar_select %p148, %s22, 0
          %s150 = smul.addr %s149, 8
          %s151 = scalar_lea.vmem %s1, %s150
        $region16: #{tpu_custom_call.1} parent=11 // pred_fallthru
          _
        // Predicated region
        $region17: #{tpu_custom_call.1} parent=11 // pred_check
          %p152 = pneg %p102
        $region18: #{tpu_custom_call.1} parent=11 // pred_check_branch
          %154 = sbr.rel (%p152) target = $region20
        $region19: #{tpu_custom_call.1} parent=11 // pred_region
          %p155 = scmp.lt.s32.totalorder %s22, 0
          %s156 = scalar_select %p155, %s22, 0
          %s157 = smul.addr %s156, 8
          %s158 = scalar_lea.vmem %s2, %s157
        $region20: #{tpu_custom_call.1} parent=11 // pred_fallthru
          _
      $region12: #{tpu_custom_call.1} parent=5 // pred_fallthru
        _
      %p159 = scmp.lt.s32.totalorder %s12, 2
      // Predicated region
      $region21: #{tpu_custom_call.1} parent=5 // pred_check
        %p160 = pneg %p159
      $region22: #{tpu_custom_call.1} parent=5 // pred_check_branch
        %162 = sbr.rel (%p160) target = $region24
      $region23: #{tpu_custom_call.1} parent=5 // pred_region
        // Predicated region
        $region25: #{tpu_custom_call.1} parent=23 // pred_check
          %p163 = pneg %p44
        $region26: #{tpu_custom_call.1} parent=23 // pred_check_branch
          %165 = sbr.rel (%p163) target = $region28
        $region27: #{tpu_custom_call.1} parent=23 // pred_region
          %s166 = smul.u32 8, %s19
          %p167 = scmp.lt.s32.totalorder %s166, 15
          %s168 = scalar_select %p167, %s166, 15
          %s169 = smul.addr %s168, 5
          %s170 = smul.addr %s169, 8
          %s171 = scalar_lea.vmem %s0, %s170
          %s172 = smul.u32 8, %s19
        $region28: #{tpu_custom_call.1} parent=23 // pred_fallthru
          _
      $region24: #{tpu_custom_call.1} parent=5 // pred_fallthru
        _
      %p173 = scmp.le.s32.totalorder 1, %s12
      %p174 = scmp.lt.s32.totalorder %s12, 3
      %p175 = pnand %p173, %p174
      %p176 = pneg %p175
      // Predicated region
      $region29: #{tpu_custom_call.1} parent=5 // pred_check
        _
      $region30: #{tpu_custom_call.1} parent=5 // pred_check_branch
        %178 = sbr.rel (%p175) target = $region32
      $region31: #{tpu_custom_call.1} parent=5 // pred_region
        %s179 = ssub.s32 %s12, 1
        %s180 = smul.u32 8, %s21
        %p181 = scmp.lt.s32.totalorder %s180, 15
        %s182 = scalar_select %p181, %s180, 15
        %s183 = smul.addr %s182, 5
        %s184 = smul.addr %s183, 8
        %s185 = scalar_lea.vmem %s0, %s184
        %p186 = pneg %p50
        %p187 = pneg %p47
        %p188 = scmp.lt.s32.totalorder %s22, 0
        %s189 = scalar_select %p188, %s22, 0
        %s190 = smul.addr %s189, 8
        %s191 = scalar_lea.vmem %s1, %s190
        %p192 = pneg %p76
        %p193 = pneg %p73
        %p194 = scmp.lt.s32.totalorder %s22, 0
        %s195 = scalar_select %p194, %s22, 0
        %s196 = smul.addr %s195, 8
        %s197 = scalar_lea.vmem %s2, %s196
        %p198 = pneg %p102
        %p199 = pneg %p99
        %p200 = pneg %p130
        %p201 = pneg %p127
        %s202 = sand.u32 %s117, 1
        %s203 = scalar_lea.sflag [#allocation3], %s202
        %s204 = sand.u32 %s117, 1
        %s205 = smul.addr %s204, 320
        %s206 = scalar_lea.vmem [#allocation2], %s205
        %s207 = smul.u32 8, %s21
        %p208 = scmp.lt.s32.totalorder %s207, 15
        %s209 = scalar_select %p208, %s207, 15
        %s210 = smul.addr %s209, 5
        %s211 = smul.addr %s210, 8
        %s212 = scalar_lea.vmem %s0, %s211
        %s213 = smul.u32 8, %s21
        %p214 = scmp.lt.s32.totalorder %s22, 0
        %s215 = scalar_select %p214, %s22, 0
        %s216 = smul.addr %s215, 8
        %s217 = scalar_lea.vmem %s1, %s216
        %p218 = scmp.lt.s32.totalorder %s22, 0
        %s219 = scalar_select %p218, %s22, 0
        %s220 = smul.addr %s219, 8
        %s221 = scalar_lea.vmem %s2, %s220
        %s222 = smul.u32 8, %s21
        %v223 = vld [vmem:[%s212] sm:$0xff]
        %v224 = vld [vmem:[%s212 + $0x8] sm:$0xff]
        %v225 = vld [vmem:[%s212 + $0x10] sm:$0xff]
        %v226 = vld [vmem:[%s212 + $0x18] sm:$0xff]
        %v227 = vld [vmem:[%s212 + $0x20] sm:$0xff]
        %v228 = vld [vmem:[%s212 + $0x28] sm:$0xff]
        %v229 = vld [vmem:[%s212 + $0x30] sm:$0xff]
        %v230 = vld [vmem:[%s212 + $0x38] sm:$0xff]
        %v231 = vld [vmem:[%s212 + $0x40] sm:$0xff]
        %v232 = vld [vmem:[%s212 + $0x48] sm:$0xff]
        %v233 = vld [vmem:[%s212 + $0x50] sm:$0xff]
        %v234 = vld [vmem:[%s212 + $0x58] sm:$0xff]
        %v235 = vld [vmem:[%s212 + $0x60] sm:$0xff]
        %v236 = vld [vmem:[%s212 + $0x68] sm:$0xff]
        %v237 = vld [vmem:[%s212 + $0x70] sm:$0xff]
        %v238 = vld [vmem:[%s212 + $0x78] sm:$0xff]
        %v239 = vld [vmem:[%s212 + $0x80] sm:$0xff]
        %v240 = vld [vmem:[%s212 + $0x88] sm:$0xff]
        %v241 = vld [vmem:[%s212 + $0x90] sm:$0xff]
        %v242 = vld [vmem:[%s212 + $0x98] sm:$0xff]
        %v243 = vld [vmem:[%s212 + $0xa0] sm:$0xff]
        %v244 = vld [vmem:[%s212 + $0xa8] sm:$0xff]
        %v245 = vld [vmem:[%s212 + $0xb0] sm:$0xff]
        %v246 = vld [vmem:[%s212 + $0xb8] sm:$0xff]
        %v247 = vld [vmem:[%s212 + $0xc0] sm:$0xff]
        %v248 = vld [vmem:[%s212 + $0xc8] sm:$0xff]
        %v249 = vld [vmem:[%s212 + $0xd0] sm:$0xff]
        %v250 = vld [vmem:[%s212 + $0xd8] sm:$0xff]
        %v251 = vld [vmem:[%s212 + $0xe0] sm:$0xff]
        %v252 = vld [vmem:[%s212 + $0xe8] sm:$0xff]
        %v253 = vld [vmem:[%s212 + $0xf0] sm:$0xff]
        %v254 = vld [vmem:[%s212 + $0xf8] sm:$0xff]
        %v255 = vld [vmem:[%s212 + $0x100] sm:$0xff]
        %v256 = vld [vmem:[%s212 + $0x108] sm:$0xff]
        %v257 = vld [vmem:[%s212 + $0x110] sm:$0xff]
        %v258 = vld [vmem:[%s212 + $0x118] sm:$0xff]
        %v259 = vld [vmem:[%s212 + $0x120] sm:$0xff]
        %v260 = vld [vmem:[%s212 + $0x128] sm:$0xff]
        %v261 = vld [vmem:[%s212 + $0x130] sm:$0xff]
        %v262 = vld [vmem:[%s212 + $0x138] sm:$0xff]
        %v263 = vld [vmem:[%s217] sm:$0xff]
        %v264 = vld [vmem:[%s217 + $0x8] sm:$0xff]
        %vm265 = vcmask 130048
        %v267 = vsel %vm265, %v223, 0
        %v270 = vsel %vm265, %v224, 0
        %v273 = vsel %vm265, %v225, 0
        %v276 = vsel %vm265, %v226, 0
        %v279 = vsel %vm265, %v227, 0
        %v282 = vsel %vm265, %v228, 0
        %v285 = vsel %vm265, %v229, 0
        %v288 = vsel %vm265, %v230, 0
        %v291 = vsel %vm265, %v231, 0
        %v294 = vsel %vm265, %v232, 0
        %v297 = vsel %vm265, %v233, 0
        %v300 = vsel %vm265, %v234, 0
        %v303 = vsel %vm265, %v235, 0
        %v306 = vsel %vm265, %v236, 0
        %v309 = vsel %vm265, %v237, 0
        %v312 = vsel %vm265, %v238, 0
        %v315 = vsel %vm265, %v239, 0
        %v318 = vsel %vm265, %v240, 0
        %v321 = vsel %vm265, %v241, 0
        %v324 = vsel %vm265, %v242, 0
        %v327 = vsel %vm265, %v243, 0
        %v330 = vsel %vm265, %v244, 0
        %v333 = vsel %vm265, %v245, 0
        %v336 = vsel %vm265, %v246, 0
        %v339 = vsel %vm265, %v247, 0
        %v342 = vsel %vm265, %v248, 0
        %v345 = vsel %vm265, %v249, 0
        %v348 = vsel %vm265, %v250, 0
        %v351 = vsel %vm265, %v251, 0
        %v354 = vsel %vm265, %v252, 0
        %v357 = vsel %vm265, %v253, 0
        %v360 = vsel %vm265, %v254, 0
        %v363 = vsel %vm265, %v255, 0
        %v366 = vsel %vm265, %v256, 0
        %v369 = vsel %vm265, %v257, 0
        %v372 = vsel %vm265, %v258, 0
        %v375 = vsel %vm265, %v259, 0
        %v378 = vsel %vm265, %v260, 0
        %v381 = vsel %vm265, %v261, 0
        %v384 = vsel %vm265, %v262, 0
        %386 = vmatprep.subr.mxu0 0.0
        %v387 = vand.u32 %v263, 4294901760
        %388 = vmatpush1.msra.mxu0 %v387
        %389 = vmatprep.subr.mxu0 0.0
        %v390 = vand.u32 %v264, 4294901760
        %391 = vmatpush1.msra.mxu0 %v390
        %392 = vmatprep.subr.mxu0 0.0
        %393 = vmatpush1.msra.mxu0 0.0
        %394 = vmatprep.subr.mxu0 0.0
        %395 = vmatpush1.msra.mxu0 0.0
        %396 = vmatprep.subr.mxu0 0.0
        %397 = vmatpush1.msra.mxu0 0.0
        %398 = vmatprep.subr.mxu0 0.0
        %399 = vmatpush1.msra.mxu0 0.0
        %400 = vmatprep.subr.mxu0 0.0
        %401 = vmatpush1.msra.mxu0 0.0
        %402 = vmatprep.subr.mxu0 0.0
        %403 = vmatpush1.msra.mxu0 0.0
        %404 = vmatprep.subr.mxu0 0.0
        %405 = vmatpush1.msra.mxu0 0.0
        %406 = vmatprep.subr.mxu0 0.0
        %407 = vmatpush1.msra.mxu0 0.0
        %408 = vmatprep.subr.mxu0 0.0
        %409 = vmatpush1.msra.mxu0 0.0
        %410 = vmatprep.subr.mxu0 0.0
        %411 = vmatpush1.msra.mxu0 0.0
        %412 = vmatprep.subr.mxu0 0.0
        %413 = vmatpush1.msra.mxu0 0.0
        %414 = vmatprep.subr.mxu0 0.0
        %415 = vmatpush1.msra.mxu0 0.0
        %416 = vmatprep.subr.mxu0 0.0
        %417 = vmatpush1.msra.mxu0 0.0
        %418 = vmatprep.subr.mxu0 0.0
        %419 = vmatpush1.msra.mxu0 0.0
        %420 = vmatprep.subr.mxu0 0.0
        %421 = vmatpush1.msra.mxu0 0.0
        %422 = vmatprep.subr.mxu0 0.0
        %423 = vmatpush1.msra.mxu0 0.0
        %424 = vmatprep.subr.mxu0 0.0
        %425 = vmatpush1.msra.mxu0 0.0
        %426 = vmatprep.subr.mxu0 0.0
        %427 = vmatpush1.msra.mxu0 0.0
        %428 = vmatprep.subr.mxu0 0.0
        %429 = vmatpush1.msra.mxu0 0.0
        %430 = vmatprep.subr.mxu0 0.0
        %431 = vmatpush1.msra.mxu0 0.0
        %432 = vmatprep.subr.mxu0 0.0
        %433 = vmatpush1.msra.mxu0 0.0
        %434 = vmatprep.subr.mxu0 0.0
        %435 = vmatpush1.msra.mxu0 0.0
        %436 = vmatprep.subr.mxu0 0.0
        %437 = vmatpush1.msra.mxu0 0.0
        %438 = vmatprep.subr.mxu0 0.0
        %439 = vmatpush1.msra.mxu0 0.0
        %440 = vmatprep.subr.mxu0 0.0
        %441 = vmatpush1.msra.mxu0 0.0
        %442 = vmatprep.subr.mxu0 0.0
        %443 = vmatpush1.msra.mxu0 0.0
        %444 = vmatprep.subr.mxu0 0.0
        %445 = vmatpush1.msra.mxu0 0.0
        %446 = vmatprep.subr.mxu0 0.0
        %447 = vmatpush1.msra.mxu0 0.0
        %448 = vmatprep.subr.mxu0 0.0
        %449 = vmatpush1.msra.mxu0 0.0
        %450 = vmatprep.subr.mxu0 0.0
        %451 = vmatpush1.msra.mxu0 0.0
        %452 = vmatprep.mubr.f32.mxu0 0.0
        %v453 = vand.u32 %v267, 4294901760
        %v454 = vsub.f32 %v267, %v453
        %v455 = vand.u32 %v454, 4294901760
        %v456 = vsub.f32 %v454, %v455
        %v457 = vand.u32 %v456, 4294901760
        %458 = vmatmul.mubr.f32.gmra.mrb[0].mxu0 %v457
        %v459 = vpop.f32.mrb[0].mxu0
        %v460 = vadd.f32 0.0, %v459
        %v461 = vpop.f32.mrb[0].mxu0
        %462 = vmatprep.mubr.f32.mxu0 0.0
        %v463 = vand.u32 %v270, 4294901760
        %v464 = vsub.f32 %v270, %v463
        %v465 = vand.u32 %v464, 4294901760
        %v466 = vsub.f32 %v464, %v465
        %v467 = vand.u32 %v466, 4294901760
        %468 = vmatmul.mubr.f32.gmra.mrb[0].mxu0 %v467
        %v469 = vpop.f32.mrb[0].mxu0
        %v470 = vadd.f32 0.0, %v469
        %v471 = vpop.f32.mrb[0].mxu0
        %472 = vmatprep.mubr.f32.mxu0 0.0
        %v473 = vand.u32 %v273, 4294901760
        %v474 = vsub.f32 %v273, %v473
        %v475 = vand.u32 %v474, 4294901760
        %v476 = vsub.f32 %v474, %v475
        %v477 = vand.u32 %v476, 4294901760
        %478 = vmatmul.mubr.f32.gmra.mrb[0].mxu0 %v477
        %v479 = vpop.f32.mrb[0].mxu0
        %v480 = vadd.f32 0.0, %v479
        %v481 = vpop.f32.mrb[0].mxu0
        %482 = vmatprep.mubr.f32.mxu0 0.0
        %v483 = vand.u32 %v276, 4294901760
        %v484 = vsub.f32 %v276, %v483
        %v485 = vand.u32 %v484, 4294901760
        %v486 = vsub.f32 %v484, %v485
        %v487 = vand.u32 %v486, 4294901760
        %488 = vmatmul.mubr.f32.gmra.mrb[0].mxu0 %v487
        %v489 = vpop.f32.mrb[0].mxu0
        %v490 = vadd.f32 0.0, %v489
        %v491 = vpop.f32.mrb[0].mxu0
        %492 = vmatprep.mubr.f32.mxu0 0.0
        %v493 = vand.u32 %v279, 4294901760
        %v494 = vsub.f32 %v279, %v493
        %v495 = vand.u32 %v494, 4294901760
        %v496 = vsub.f32 %v494, %v495
        %v497 = vand.u32 %v496, 4294901760
        %498 = vmatmul.mubr.f32.gmra.mrb[0].mxu0 %v497
        %v499 = vpop.f32.mrb[0].mxu0
        %v500 = vadd.f32 0.0, %v499
        %v501 = vpop.f32.mrb[0].mxu0
        %502 = vmatprep.mubr.f32.mxu0 0.0
        %v503 = vand.u32 %v282, 4294901760
        %v504 = vsub.f32 %v282, %v503
        %v505 = vand.u32 %v504, 4294901760
        %v506 = vsub.f32 %v504, %v505
        %v507 = vand.u32 %v506, 4294901760
        %508 = vmatmul.mubr.f32.gmra.mrb[0].mxu0 %v507
        %v509 = vpop.f32.mrb[0].mxu0
        %v510 = vadd.f32 0.0, %v509
        %v511 = vpop.f32.mrb[0].mxu0
        %512 = vmatprep.mubr.f32.mxu0 0.0
        %v513 = vand.u32 %v285, 4294901760
        %v514 = vsub.f32 %v285, %v513
        %v515 = vand.u32 %v514, 4294901760
        %v516 = vsub.f32 %v514, %v515
        %v517 = vand.u32 %v516, 4294901760
        %518 = vmatmul.mubr.f32.gmra.mrb[0].mxu0 %v517
        %v519 = vpop.f32.mrb[0].mxu0
        %v520 = vadd.f32 0.0, %v519
        %v521 = vpop.f32.mrb[0].mxu0
        %522 = vmatprep.mubr.f32.mxu0 0.0
        %v523 = vand.u32 %v288, 4294901760
        %v524 = vsub.f32 %v288, %v523
        %v525 = vand.u32 %v524, 4294901760
        %v526 = vsub.f32 %v524, %v525
        %v527 = vand.u32 %v526, 4294901760
        %528 = vmatmul.mubr.f32.gmra.mrb[0].mxu0 %v527
        %v529 = vpop.f32.mrb[0].mxu0
        %v530 = vadd.f32 0.0, %v529
        %v531 = vpop.f32.mrb[0].mxu0
        %532 = vmatprep.mubr.f32.mxu0 0.0
        %v533 = vand.u32 %v291, 4294901760
        %v534 = vsub.f32 %v291, %v533
        %v535 = vand.u32 %v534, 4294901760
        %v536 = vsub.f32 %v534, %v535
        %v537 = vand.u32 %v536, 4294901760
        %538 = vmatmul.mubr.f32.gmra.mrb[0].mxu0 %v537
        %v539 = vpop.f32.mrb[0].mxu0
        %v540 = vadd.f32 0.0, %v539
        %v541 = vpop.f32.mrb[0].mxu0
        %542 = vmatprep.mubr.f32.mxu0 0.0
        %v543 = vand.u32 %v294, 4294901760
        %v544 = vsub.f32 %v294, %v543
        %v545 = vand.u32 %v544, 4294901760
        %v546 = vsub.f32 %v544, %v545
        %v547 = vand.u32 %v546, 4294901760
        %548 = vmatmul.mubr.f32.gmra.mrb[0].mxu0 %v547
        %v549 = vpop.f32.mrb[0].mxu0
        %v550 = vadd.f32 0.0, %v549
        %v551 = vpop.f32.mrb[0].mxu0
        %552 = vmatprep.mubr.f32.mxu0 0.0
        %v553 = vand.u32 %v297, 4294901760
        %v554 = vsub.f32 %v297, %v553
        %v555 = vand.u32 %v554, 4294901760
        %v556 = vsub.f32 %v554, %v555
        %v557 = vand.u32 %v556, 4294901760
        %558 = vmatmul.mubr.f32.gmra.mrb[0].mxu0 %v557
        %v559 = vpop.f32.mrb[0].mxu0
        %v560 = vadd.f32 0.0, %v559
        %v561 = vpop.f32.mrb[0].mxu0
        %562 = vmatprep.mubr.f32.mxu0 0.0
        %v563 = vand.u32 %v300, 4294901760
        %v564 = vsub.f32 %v300, %v563
        %v565 = vand.u32 %v564, 4294901760
        %v566 = vsub.f32 %v564, %v565
        %v567 = vand.u32 %v566, 4294901760
        %568 = vmatmul.mubr.f32.gmra.mrb[0].mxu0 %v567
        %v569 = vpop.f32.mrb[0].mxu0
        %v570 = vadd.f32 0.0, %v569
        %v571 = vpop.f32.mrb[0].mxu0
        %572 = vmatprep.mubr.f32.mxu0 0.0
        %v573 = vand.u32 %v303, 4294901760
        %v574 = vsub.f32 %v303, %v573
        %v575 = vand.u32 %v574, 4294901760
        %v576 = vsub.f32 %v574, %v575
        %v577 = vand.u32 %v576, 4294901760
        %578 = vmatmul.mubr.f32.gmra.mrb[0].mxu0 %v577
        %v579 = vpop.f32.mrb[0].mxu0
        %v580 = vadd.f32 0.0, %v579
        %v581 = vpop.f32.mrb[0].mxu0
        %582 = vmatprep.mubr.f32.mxu0 0.0
        %v583 = vand.u32 %v306, 4294901760
        %v584 = vsub.f32 %v306, %v583
        %v585 = vand.u32 %v584, 4294901760
        %v586 = vsub.f32 %v584, %v585
        %v587 = vand.u32 %v586, 4294901760
        %588 = vmatmul.mubr.f32.gmra.mrb[0].mxu0 %v587
        %v589 = vpop.f32.mrb[0].mxu0
        %v590 = vadd.f32 0.0, %v589
        %v591 = vpop.f32.mrb[0].mxu0
        %592 = vmatprep.mubr.f32.mxu0 0.0
        %v593 = vand.u32 %v309, 4294901760
        %v594 = vsub.f32 %v309, %v593
        %v595 = vand.u32 %v594, 4294901760
        %v596 = vsub.f32 %v594, %v595
        %v597 = vand.u32 %v596, 4294901760
        %598 = vmatmul.mubr.f32.gmra.mrb[0].mxu0 %v597
        %v599 = vpop.f32.mrb[0].mxu0
        %v600 = vadd.f32 0.0, %v599
        %v601 = vpop.f32.mrb[0].mxu0
        %602 = vmatprep.mubr.f32.mxu0 0.0
        %v603 = vand.u32 %v312, 4294901760
        %v604 = vsub.f32 %v312, %v603
        %v605 = vand.u32 %v604, 4294901760
        %v606 = vsub.f32 %v604, %v605
        %v607 = vand.u32 %v606, 4294901760
        %608 = vmatmul.mubr.f32.gmra.mrb[0].mxu0 %v607
        %v609 = vpop.f32.mrb[0].mxu0
        %v610 = vadd.f32 0.0, %v609
        %v611 = vpop.f32.mrb[0].mxu0
        %612 = vmatprep.mubr.f32.mxu0 0.0
        %v613 = vand.u32 %v315, 4294901760
        %v614 = vsub.f32 %v315, %v613
        %v615 = vand.u32 %v614, 4294901760
        %v616 = vsub.f32 %v614, %v615
        %v617 = vand.u32 %v616, 4294901760
        %618 = vmatmul.mubr.f32.gmra.mrb[0].mxu0 %v617
        %v619 = vpop.f32.mrb[0].mxu0
        %v620 = vadd.f32 0.0, %v619
        %v621 = vpop.f32.mrb[0].mxu0
        %622 = vmatprep.mubr.f32.mxu0 0.0
        %v623 = vand.u32 %v318, 4294901760
        %v624 = vsub.f32 %v318, %v623
        %v625 = vand.u32 %v624, 4294901760
        %v626 = vsub.f32 %v624, %v625
        %v627 = vand.u32 %v626, 4294901760
        %628 = vmatmul.mubr.f32.gmra.mrb[0].mxu0 %v627
        %v629 = vpop.f32.mrb[0].mxu0
        %v630 = vadd.f32 0.0, %v629
        %v631 = vpop.f32.mrb[0].mxu0
        %632 = vmatprep.mubr.f32.mxu0 0.0
        %v633 = vand.u32 %v321, 4294901760
        %v634 = vsub.f32 %v321, %v633
        %v635 = vand.u32 %v634, 4294901760
        %v636 = vsub.f32 %v634, %v635
        %v637 = vand.u32 %v636, 4294901760
        %638 = vmatmul.mubr.f32.gmra.mrb[0].mxu0 %v637
        %v639 = vpop.f32.mrb[0].mxu0
        %v640 = vadd.f32 0.0, %v639
        %v641 = vpop.f32.mrb[0].mxu0
        %642 = vmatprep.mubr.f32.mxu0 0.0
        %v643 = vand.u32 %v324, 4294901760
        %v644 = vsub.f32 %v324, %v643
        %v645 = vand.u32 %v644, 4294901760
        %v646 = vsub.f32 %v644, %v645
        %v647 = vand.u32 %v646, 4294901760
        %648 = vmatmul.mubr.f32.gmra.mrb[0].mxu0 %v647
        %v649 = vpop.f32.mrb[0].mxu0
        %v650 = vadd.f32 0.0, %v649
        %v651 = vpop.f32.mrb[0].mxu0
        %652 = vmatprep.mubr.f32.mxu0 0.0
        %v653 = vand.u32 %v327, 4294901760
        %v654 = vsub.f32 %v327, %v653
        %v655 = vand.u32 %v654, 4294901760
        %v656 = vsub.f32 %v654, %v655
        %v657 = vand.u32 %v656, 4294901760
        %658 = vmatmul.mubr.f32.gmra.mrb[0].mxu0 %v657
        %v659 = vpop.f32.mrb[0].mxu0
        %v660 = vadd.f32 0.0, %v659
        %v661 = vpop.f32.mrb[0].mxu0
        %662 = vmatprep.mubr.f32.mxu0 0.0
        %v663 = vand.u32 %v330, 4294901760
        %v664 = vsub.f32 %v330, %v663
        %v665 = vand.u32 %v664, 4294901760
        %v666 = vsub.f32 %v664, %v665
        %v667 = vand.u32 %v666, 4294901760
        %668 = vmatmul.mubr.f32.gmra.mrb[0].mxu0 %v667
        %v669 = vpop.f32.mrb[0].mxu0
        %v670 = vadd.f32 0.0, %v669
        %v671 = vpop.f32.mrb[0].mxu0
        %672 = vmatprep.mubr.f32.mxu0 0.0
        %v673 = vand.u32 %v333, 4294901760
        %v674 = vsub.f32 %v333, %v673
        %v675 = vand.u32 %v674, 4294901760
        %v676 = vsub.f32 %v674, %v675
        %v677 = vand.u32 %v676, 4294901760
        %678 = vmatmul.mubr.f32.gmra.mrb[0].mxu0 %v677
        %v679 = vpop.f32.mrb[0].mxu0
        %v680 = vadd.f32 0.0, %v679
        %v681 = vpop.f32.mrb[0].mxu0
        %682 = vmatprep.mubr.f32.mxu0 0.0
        %v683 = vand.u32 %v336, 4294901760
        %v684 = vsub.f32 %v336, %v683
        %v685 = vand.u32 %v684, 4294901760
        %v686 = vsub.f32 %v684, %v685
        %v687 = vand.u32 %v686, 4294901760
        %688 = vmatmul.mubr.f32.gmra.mrb[0].mxu0 %v687
        %v689 = vpop.f32.mrb[0].mxu0
        %v690 = vadd.f32 0.0, %v689
        %v691 = vpop.f32.mrb[0].mxu0
        %692 = vmatprep.mubr.f32.mxu0 0.0
        %v693 = vand.u32 %v339, 4294901760
        %v694 = vsub.f32 %v339, %v693
        %v695 = vand.u32 %v694, 4294901760
        %v696 = vsub.f32 %v694, %v695
        %v697 = vand.u32 %v696, 4294901760
        %698 = vmatmul.mubr.f32.gmra.mrb[0].mxu0 %v697
        %v699 = vpop.f32.mrb[0].mxu0
        %v700 = vadd.f32 0.0, %v699
        %v701 = vpop.f32.mrb[0].mxu0
        %702 = vmatprep.mubr.f32.mxu0 0.0
        %v703 = vand.u32 %v342, 4294901760
        %v704 = vsub.f32 %v342, %v703
        %v705 = vand.u32 %v704, 4294901760
        %v706 = vsub.f32 %v704, %v705
        %v707 = vand.u32 %v706, 4294901760
        %708 = vmatmul.mubr.f32.gmra.mrb[0].mxu0 %v707
        %v709 = vpop.f32.mrb[0].mxu0
        %v710 = vadd.f32 0.0, %v709
        %v711 = vpop.f32.mrb[0].mxu0
        %712 = vmatprep.mubr.f32.mxu0 0.0
        %v713 = vand.u32 %v345, 4294901760
        %v714 = vsub.f32 %v345, %v713
        %v715 = vand.u32 %v714, 4294901760
        %v716 = vsub.f32 %v714, %v715
        %v717 = vand.u32 %v716, 4294901760
        %718 = vmatmul.mubr.f32.gmra.mrb[0].mxu0 %v717
        %v719 = vpop.f32.mrb[0].mxu0
        %v720 = vadd.f32 0.0, %v719
        %v721 = vpop.f32.mrb[0].mxu0
        %722 = vmatprep.mubr.f32.mxu0 0.0
        %v723 = vand.u32 %v348, 4294901760
        %v724 = vsub.f32 %v348, %v723
        %v725 = vand.u32 %v724, 4294901760
        %v726 = vsub.f32 %v724, %v725
        %v727 = vand.u32 %v726, 4294901760
        %728 = vmatmul.mubr.f32.gmra.mrb[0].mxu0 %v727
        %v729 = vpop.f32.mrb[0].mxu0
        %v730 = vadd.f32 0.0, %v729
        %v731 = vpop.f32.mrb[0].mxu0
        %732 = vmatprep.mubr.f32.mxu0 0.0
        %v733 = vand.u32 %v351, 4294901760
        %v734 = vsub.f32 %v351, %v733
        %v735 = vand.u32 %v734, 4294901760
        %v736 = vsub.f32 %v734, %v735
        %v737 = vand.u32 %v736, 4294901760
        %738 = vmatmul.mubr.f32.gmra.mrb[0].mxu0 %v737
        %v739 = vpop.f32.mrb[0].mxu0
        %v740 = vadd.f32 0.0, %v739
        %v741 = vpop.f32.mrb[0].mxu0
        %742 = vmatprep.mubr.f32.mxu0 0.0
        %v743 = vand.u32 %v354, 4294901760
        %v744 = vsub.f32 %v354, %v743
        %v745 = vand.u32 %v744, 4294901760
        %v746 = vsub.f32 %v744, %v745
        %v747 = vand.u32 %v746, 4294901760
        %748 = vmatmul.mubr.f32.gmra.mrb[0].mxu0 %v747
        %v749 = vpop.f32.mrb[0].mxu0
        %v750 = vadd.f32 0.0, %v749
        %v751 = vpop.f32.mrb[0].mxu0
        %752 = vmatprep.mubr.f32.mxu0 0.0
        %v753 = vand.u32 %v357, 4294901760
        %v754 = vsub.f32 %v357, %v753
        %v755 = vand.u32 %v754, 4294901760
        %v756 = vsub.f32 %v754, %v755
        %v757 = vand.u32 %v756, 4294901760
        %758 = vmatmul.mubr.f32.gmra.mrb[0].mxu0 %v757
        %v759 = vpop.f32.mrb[0].mxu0
        %v760 = vadd.f32 0.0, %v759
        %v761 = vpop.f32.mrb[0].mxu0
        %762 = vmatprep.mubr.f32.mxu0 0.0
        %v763 = vand.u32 %v360, 4294901760
        %v764 = vsub.f32 %v360, %v763
        %v765 = vand.u32 %v764, 4294901760
        %v766 = vsub.f32 %v764, %v765
        %v767 = vand.u32 %v766, 4294901760
        %768 = vmatmul.mubr.f32.gmra.mrb[0].mxu0 %v767
        %v769 = vpop.f32.mrb[0].mxu0
        %v770 = vadd.f32 0.0, %v769
        %v771 = vpop.f32.mrb[0].mxu0
        %772 = vmatprep.mubr.f32.mxu0 0.0
        %v773 = vand.u32 %v363, 4294901760
        %v774 = vsub.f32 %v363, %v773
        %v775 = vand.u32 %v774, 4294901760
        %v776 = vsub.f32 %v774, %v775
        %v777 = vand.u32 %v776, 4294901760
        %778 = vmatmul.mubr.f32.gmra.mrb[0].mxu0 %v777
        %v779 = vpop.f32.mrb[0].mxu0
        %v780 = vadd.f32 0.0, %v779
        %v781 = vpop.f32.mrb[0].mxu0
        %782 = vmatprep.mubr.f32.mxu0 0.0
        %v783 = vand.u32 %v366, 4294901760
        %v784 = vsub.f32 %v366, %v783
        %v785 = vand.u32 %v784, 4294901760
        %v786 = vsub.f32 %v784, %v785
        %v787 = vand.u32 %v786, 4294901760
        %788 = vmatmul.mubr.f32.gmra.mrb[0].mxu0 %v787
        %v789 = vpop.f32.mrb[0].mxu0
        %v790 = vadd.f32 0.0, %v789
        %v791 = vpop.f32.mrb[0].mxu0
        %792 = vmatprep.mubr.f32.mxu0 0.0
        %v793 = vand.u32 %v369, 4294901760
        %v794 = vsub.f32 %v369, %v793
        %v795 = vand.u32 %v794, 4294901760
        %v796 = vsub.f32 %v794, %v795
        %v797 = vand.u32 %v796, 4294901760
        %798 = vmatmul.mubr.f32.gmra.mrb[0].mxu0 %v797
        %v799 = vpop.f32.mrb[0].mxu0
        %v800 = vadd.f32 0.0, %v799
        %v801 = vpop.f32.mrb[0].mxu0
        %802 = vmatprep.mubr.f32.mxu0 0.0
        %v803 = vand.u32 %v372, 4294901760
        %v804 = vsub.f32 %v372, %v803
        %v805 = vand.u32 %v804, 4294901760
        %v806 = vsub.f32 %v804, %v805
        %v807 = vand.u32 %v806, 4294901760
        %808 = vmatmul.mubr.f32.gmra.mrb[0].mxu0 %v807
        %v809 = vpop.f32.mrb[0].mxu0
        %v810 = vadd.f32 0.0, %v809
        %v811 = vpop.f32.mrb[0].mxu0
        %812 = vmatprep.mubr.f32.mxu0 0.0
        %v813 = vand.u32 %v375, 4294901760
        %v814 = vsub.f32 %v375, %v813
        %v815 = vand.u32 %v814, 4294901760
        %v816 = vsub.f32 %v814, %v815
        %v817 = vand.u32 %v816, 4294901760
        %818 = vmatmul.mubr.f32.gmra.mrb[0].mxu0 %v817
        %v819 = vpop.f32.mrb[0].mxu0
        %v820 = vadd.f32 0.0, %v819
        %v821 = vpop.f32.mrb[0].mxu0
        %822 = vmatprep.mubr.f32.mxu0 0.0
        %v823 = vand.u32 %v378, 4294901760
        %v824 = vsub.f32 %v378, %v823
        %v825 = vand.u32 %v824, 4294901760
        %v826 = vsub.f32 %v824, %v825
        %v827 = vand.u32 %v826, 4294901760
        %828 = vmatmul.mubr.f32.gmra.mrb[0].mxu0 %v827
        %v829 = vpop.f32.mrb[0].mxu0
        %v830 = vadd.f32 0.0, %v829
        %v831 = vpop.f32.mrb[0].mxu0
        %832 = vmatprep.mubr.f32.mxu0 0.0
        %v833 = vand.u32 %v381, 4294901760
        %v834 = vsub.f32 %v381, %v833
        %v835 = vand.u32 %v834, 4294901760
        %v836 = vsub.f32 %v834, %v835
        %v837 = vand.u32 %v836, 4294901760
        %838 = vmatmul.mubr.f32.gmra.mrb[0].mxu0 %v837
        %v839 = vpop.f32.mrb[0].mxu0
        %v840 = vadd.f32 0.0, %v839
        %v841 = vpop.f32.mrb[0].mxu0
        %842 = vmatprep.mubr.f32.mxu0 0.0
        %v843 = vand.u32 %v384, 4294901760
        %v844 = vsub.f32 %v384, %v843
        %v845 = vand.u32 %v844, 4294901760
        %v846 = vsub.f32 %v844, %v845
        %v847 = vand.u32 %v846, 4294901760
        %848 = vmatmul.mubr.f32.gmra.mrb[0].mxu0 %v847
        %v849 = vpop.f32.mrb[0].mxu0
        %v850 = vadd.f32 0.0, %v849
        %v851 = vpop.f32.mrb[0].mxu0
        %852 = vdwg.mxu0
        %853 = vmatprep.subr.mxu0 0.0
        %v854 = vand.u32 %v263, 4294901760
        %v855 = vsub.f32 %v263, %v854
        %v856 = vand.u32 %v855, 4294901760
        %v857 = vsub.f32 %v855, %v856
        %v858 = vand.u32 %v857, 4294901760
        %859 = vmatpush1.msra.mxu0 %v858
        %860 = vmatprep.subr.mxu0 0.0
        %v861 = vand.u32 %v264, 4294901760
        %v862 = vsub.f32 %v264, %v861
        %v863 = vand.u32 %v862, 4294901760
        %v864 = vsub.f32 %v862, %v863
        %v865 = vand.u32 %v864, 4294901760
        %866 = vmatpush1.msra.mxu0 %v865
        %867 = vmatprep.subr.mxu0 0.0
        %868 = vmatpush1.msra.mxu0 0.0
        %869 = vmatprep.subr.mxu0 0.0
        %870 = vmatpush1.msra.mxu0 0.0
        %871 = vmatprep.subr.mxu0 0.0
        %872 = vmatpush1.msra.mxu0 0.0
        %873 = vmatprep.subr.mxu0 0.0
        %874 = vmatpush1.msra.mxu0 0.0
        %875 = vmatprep.subr.mxu0 0.0
        %876 = vmatpush1.msra.mxu0 0.0
        %877 = vmatprep.subr.mxu0 0.0
        %878 = vmatpush1.msra.mxu0 0.0
        %879 = vmatprep.subr.mxu0 0.0
        %880 = vmatpush1.msra.mxu0 0.0
        %881 = vmatprep.subr.mxu0 0.0
        %882 = vmatpush1.msra.mxu0 0.0
        %883 = vmatprep.subr.mxu0 0.0
        %884 = vmatpush1.msra.mxu0 0.0
        %885 = vmatprep.subr.mxu0 0.0
        %886 = vmatpush1.msra.mxu0 0.0
        %887 = vmatprep.subr.mxu0 0.0
        %888 = vmatpush1.msra.mxu0 0.0
        %889 = vmatprep.subr.mxu0 0.0
        %890 = vmatpush1.msra.mxu0 0.0
        %891 = vmatprep.subr.mxu0 0.0
        %892 = vmatpush1.msra.mxu0 0.0
        %893 = vmatprep.subr.mxu0 0.0
        %894 = vmatpush1.msra.mxu0 0.0
        %895 = vmatprep.subr.mxu0 0.0
        %896 = vmatpush1.msra.mxu0 0.0
        %897 = vmatprep.subr.mxu0 0.0
        %898 = vmatpush1.msra.mxu0 0.0
        %899 = vmatprep.subr.mxu0 0.0
        %900 = vmatpush1.msra.mxu0 0.0
        %901 = vmatprep.subr.mxu0 0.0
        %902 = vmatpush1.msra.mxu0 0.0
        %903 = vmatprep.subr.mxu0 0.0
        %904 = vmatpush1.msra.mxu0 0.0
        %905 = vmatprep.subr.mxu0 0.0
        %906 = vmatpush1.msra.mxu0 0.0
        %907 = vmatprep.subr.mxu0 0.0
        %908 = vmatpush1.msra.mxu0 0.0
        %909 = vmatprep.subr.mxu0 0.0
        %910 = vmatpush1.msra.mxu0 0.0
        %911 = vmatprep.subr.mxu0 0.0
        %912 = vmatpush1.msra.mxu0 0.0
        %913 = vmatprep.subr.mxu0 0.0
        %914 = vmatpush1.msra.mxu0 0.0
        %915 = vmatprep.subr.mxu0 0.0
        %916 = vmatpush1.msra.mxu0 0.0
        %917 = vmatprep.subr.mxu0 0.0
        %918 = vmatpush1.msra.mxu0 0.0
        %919 = vmatprep.subr.mxu0 0.0
        %920 = vmatpush1.msra.mxu0 0.0
        %921 = vmatprep.subr.mxu0 0.0
        %922 = vmatpush1.msra.mxu0 0.0
        %923 = vmatprep.subr.mxu0 0.0
        %924 = vmatpush1.msra.mxu0 0.0
        %925 = vmatprep.subr.mxu0 0.0
        %926 = vmatpush1.msra.mxu0 0.0
        %927 = vmatprep.mubr.f32.mxu0 0.0
        %v928 = vand.u32 %v267, 4294901760
        %929 = vmatmul.mubr.f32.gmra.mrb[0].mxu0 %v928
        %v930 = vpop.f32.mrb[0].mxu0
        %v931 = vadd.f32 %v460, %v930
        %v932 = vpop.f32.mrb[0].mxu0
        %933 = vmatprep.mubr.f32.mxu0 0.0
        %v934 = vand.u32 %v270, 4294901760
        %935 = vmatmul.mubr.f32.gmra.mrb[0].mxu0 %v934
        %v936 = vpop.f32.mrb[0].mxu0
        %v937 = vadd.f32 %v470, %v936
        %v938 = vpop.f32.mrb[0].mxu0
        %939 = vmatprep.mubr.f32.mxu0 0.0
        %v940 = vand.u32 %v273, 4294901760
        %941 = vmatmul.mubr.f32.gmra.mrb[0].mxu0 %v940
        %v942 = vpop.f32.mrb[0].mxu0
        %v943 = vadd.f32 %v480, %v942
        %v944 = vpop.f32.mrb[0].mxu0
        %945 = vmatprep.mubr.f32.mxu0 0.0
        %v946 = vand.u32 %v276, 4294901760
        %947 = vmatmul.mubr.f32.gmra.mrb[0].mxu0 %v946
        %v948 = vpop.f32.mrb[0].mxu0
        %v949 = vadd.f32 %v490, %v948
        %v950 = vpop.f32.mrb[0].mxu0
        %951 = vmatprep.mubr.f32.mxu0 0.0
        %v952 = vand.u32 %v279, 4294901760
        %953 = vmatmul.mubr.f32.gmra.mrb[0].mxu0 %v952
        %v954 = vpop.f32.mrb[0].mxu0
        %v955 = vadd.f32 %v500, %v954
        %v956 = vpop.f32.mrb[0].mxu0
        %957 = vmatprep.mubr.f32.mxu0 0.0
        %v958 = vand.u32 %v282, 4294901760
        %959 = vmatmul.mubr.f32.gmra.mrb[0].mxu0 %v958
        %v960 = vpop.f32.mrb[0].mxu0
        %v961 = vadd.f32 %v510, %v960
        %v962 = vpop.f32.mrb[0].mxu0
        %963 = vmatprep.mubr.f32.mxu0 0.0
        %v964 = vand.u32 %v285, 4294901760
        %965 = vmatmul.mubr.f32.gmra.mrb[0].mxu0 %v964
        %v966 = vpop.f32.mrb[0].mxu0
        %v967 = vadd.f32 %v520, %v966
        %v968 = vpop.f32.mrb[0].mxu0
        %969 = vmatprep.mubr.f32.mxu0 0.0
        %v970 = vand.u32 %v288, 4294901760
        %971 = vmatmul.mubr.f32.gmra.mrb[0].mxu0 %v970
        %v972 = vpop.f32.mrb[0].mxu0
        %v973 = vadd.f32 %v530, %v972
        %v974 = vpop.f32.mrb[0].mxu0
        %975 = vmatprep.mubr.f32.mxu0 0.0
        %v976 = vand.u32 %v291, 4294901760
        %977 = vmatmul.mubr.f32.gmra.mrb[0].mxu0 %v976
        %v978 = vpop.f32.mrb[0].mxu0
        %v979 = vadd.f32 %v540, %v978
        %v980 = vpop.f32.mrb[0].mxu0
        %981 = vmatprep.mubr.f32.mxu0 0.0
        %v982 = vand.u32 %v294, 4294901760
        %983 = vmatmul.mubr.f32.gmra.mrb[0].mxu0 %v982
        %v984 = vpop.f32.mrb[0].mxu0
        %v985 = vadd.f32 %v550, %v984
        %v986 = vpop.f32.mrb[0].mxu0
        %987 = vmatprep.mubr.f32.mxu0 0.0
        %v988 = vand.u32 %v297, 4294901760
        %989 = vmatmul.mubr.f32.gmra.mrb[0].mxu0 %v988
        %v990 = vpop.f32.mrb[0].mxu0
        %v991 = vadd.f32 %v560, %v990
        %v992 = vpop.f32.mrb[0].mxu0
        %993 = vmatprep.mubr.f32.mxu0 0.0
        %v994 = vand.u32 %v300, 4294901760
        %995 = vmatmul.mubr.f32.gmra.mrb[0].mxu0 %v994
        %v996 = vpop.f32.mrb[0].mxu0
        %v997 = vadd.f32 %v570, %v996
        %v998 = vpop.f32.mrb[0].mxu0
        %999 = vmatprep.mubr.f32.mxu0 0.0
        %v1000 = vand.u32 %v303, 4294901760
        %1001 = vmatmul.mubr.f32.gmra.mrb[0].mxu0 %v1000
        %v1002 = vpop.f32.mrb[0].mxu0
        %v1003 = vadd.f32 %v580, %v1002
        %v1004 = vpop.f32.mrb[0].mxu0
        %1005 = vmatprep.mubr.f32.mxu0 0.0
        %v1006 = vand.u32 %v306, 4294901760
        %1007 = vmatmul.mubr.f32.gmra.mrb[0].mxu0 %v1006
        %v1008 = vpop.f32.mrb[0].mxu0
        %v1009 = vadd.f32 %v590, %v1008
        %v1010 = vpop.f32.mrb[0].mxu0
        %1011 = vmatprep.mubr.f32.mxu0 0.0
        %v1012 = vand.u32 %v309, 4294901760
        %1013 = vmatmul.mubr.f32.gmra.mrb[0].mxu0 %v1012
        %v1014 = vpop.f32.mrb[0].mxu0
        %v1015 = vadd.f32 %v600, %v1014
        %v1016 = vpop.f32.mrb[0].mxu0
        %1017 = vmatprep.mubr.f32.mxu0 0.0
        %v1018 = vand.u32 %v312, 4294901760
        %1019 = vmatmul.mubr.f32.gmra.mrb[0].mxu0 %v1018
        %v1020 = vpop.f32.mrb[0].mxu0
        %v1021 = vadd.f32 %v610, %v1020
        %v1022 = vpop.f32.mrb[0].mxu0
        %1023 = vmatprep.mubr.f32.mxu0 0.0
        %v1024 = vand.u32 %v315, 4294901760
        %1025 = vmatmul.mubr.f32.gmra.mrb[0].mxu0 %v1024
        %v1026 = vpop.f32.mrb[0].mxu0
        %v1027 = vadd.f32 %v620, %v1026
        %v1028 = vpop.f32.mrb[0].mxu0
        %1029 = vmatprep.mubr.f32.mxu0 0.0
        %v1030 = vand.u32 %v318, 4294901760
        %1031 = vmatmul.mubr.f32.gmra.mrb[0].mxu0 %v1030
        %v1032 = vpop.f32.mrb[0].mxu0
        %v1033 = vadd.f32 %v630, %v1032
        %v1034 = vpop.f32.mrb[0].mxu0
        %1035 = vmatprep.mubr.f32.mxu0 0.0
        %v1036 = vand.u32 %v321, 4294901760
        %1037 = vmatmul.mubr.f32.gmra.mrb[0].mxu0 %v1036
        %v1038 = vpop.f32.mrb[0].mxu0
        %v1039 = vadd.f32 %v640, %v1038
        %v1040 = vpop.f32.mrb[0].mxu0
        %1041 = vmatprep.mubr.f32.mxu0 0.0
        %v1042 = vand.u32 %v324, 4294901760
        %1043 = vmatmul.mubr.f32.gmra.mrb[0].mxu0 %v1042
        %v1044 = vpop.f32.mrb[0].mxu0
        %v1045 = vadd.f32 %v650, %v1044
        %v1046 = vpop.f32.mrb[0].mxu0
        %1047 = vmatprep.mubr.f32.mxu0 0.0
        %v1048 = vand.u32 %v327, 4294901760
        %1049 = vmatmul.mubr.f32.gmra.mrb[0].mxu0 %v1048
        %v1050 = vpop.f32.mrb[0].mxu0
        %v1051 = vadd.f32 %v660, %v1050
        %v1052 = vpop.f32.mrb[0].mxu0
        %1053 = vmatprep.mubr.f32.mxu0 0.0
        %v1054 = vand.u32 %v330, 4294901760
        %1055 = vmatmul.mubr.f32.gmra.mrb[0].mxu0 %v1054
        %v1056 = vpop.f32.mrb[0].mxu0
        %v1057 = vadd.f32 %v670, %v1056
        %v1058 = vpop.f32.mrb[0].mxu0
        %1059 = vmatprep.mubr.f32.mxu0 0.0
        %v1060 = vand.u32 %v333, 4294901760
        %1061 = vmatmul.mubr.f32.gmra.mrb[0].mxu0 %v1060
        %v1062 = vpop.f32.mrb[0].mxu0
        %v1063 = vadd.f32 %v680, %v1062
        %v1064 = vpop.f32.mrb[0].mxu0
        %1065 = vmatprep.mubr.f32.mxu0 0.0
        %v1066 = vand.u32 %v336, 4294901760
        %1067 = vmatmul.mubr.f32.gmra.mrb[0].mxu0 %v1066
        %v1068 = vpop.f32.mrb[0].mxu0
        %v1069 = vadd.f32 %v690, %v1068
        %v1070 = vpop.f32.mrb[0].mxu0
        %1071 = vmatprep.mubr.f32.mxu0 0.0
        %v1072 = vand.u32 %v339, 4294901760
        %1073 = vmatmul.mubr.f32.gmra.mrb[0].mxu0 %v1072
        %v1074 = vpop.f32.mrb[0].mxu0
        %v1075 = vadd.f32 %v700, %v1074
        %v1076 = vpop.f32.mrb[0].mxu0
        %1077 = vmatprep.mubr.f32.mxu0 0.0
        %v1078 = vand.u32 %v342, 4294901760
        %1079 = vmatmul.mubr.f32.gmra.mrb[0].mxu0 %v1078
        %v1080 = vpop.f32.mrb[0].mxu0
        %v1081 = vadd.f32 %v710, %v1080
        %v1082 = vpop.f32.mrb[0].mxu0
        %1083 = vmatprep.mubr.f32.mxu0 0.0
        %v1084 = vand.u32 %v345, 4294901760
        %1085 = vmatmul.mubr.f32.gmra.mrb[0].mxu0 %v1084
        %v1086 = vpop.f32.mrb[0].mxu0
        %v1087 = vadd.f32 %v720, %v1086
        %v1088 = vpop.f32.mrb[0].mxu0
        %1089 = vmatprep.mubr.f32.mxu0 0.0
        %v1090 = vand.u32 %v348, 4294901760
        %1091 = vmatmul.mubr.f32.gmra.mrb[0].mxu0 %v1090
        %v1092 = vpop.f32.mrb[0].mxu0
        %v1093 = vadd.f32 %v730, %v1092
        %v1094 = vpop.f32.mrb[0].mxu0
        %1095 = vmatprep.mubr.f32.mxu0 0.0
        %v1096 = vand.u32 %v351, 4294901760
        %1097 = vmatmul.mubr.f32.gmra.mrb[0].mxu0 %v1096
        %v1098 = vpop.f32.mrb[0].mxu0
        %v1099 = vadd.f32 %v740, %v1098
        %v1100 = vpop.f32.mrb[0].mxu0
        %1101 = vmatprep.mubr.f32.mxu0 0.0
        %v1102 = vand.u32 %v354, 4294901760
        %1103 = vmatmul.mubr.f32.gmra.mrb[0].mxu0 %v1102
        %v1104 = vpop.f32.mrb[0].mxu0
        %v1105 = vadd.f32 %v750, %v1104
        %v1106 = vpop.f32.mrb[0].mxu0
        %1107 = vmatprep.mubr.f32.mxu0 0.0
        %v1108 = vand.u32 %v357, 4294901760
        %1109 = vmatmul.mubr.f32.gmra.mrb[0].mxu0 %v1108
        %v1110 = vpop.f32.mrb[0].mxu0
        %v1111 = vadd.f32 %v760, %v1110
        %v1112 = vpop.f32.mrb[0].mxu0
        %1113 = vmatprep.mubr.f32.mxu0 0.0
        %v1114 = vand.u32 %v360, 4294901760
        %1115 = vmatmul.mubr.f32.gmra.mrb[0].mxu0 %v1114
        %v1116 = vpop.f32.mrb[0].mxu0
        %v1117 = vadd.f32 %v770, %v1116
        %v1118 = vpop.f32.mrb[0].mxu0
        %1119 = vmatprep.mubr.f32.mxu0 0.0
        %v1120 = vand.u32 %v363, 4294901760
        %1121 = vmatmul.mubr.f32.gmra.mrb[0].mxu0 %v1120
        %v1122 = vpop.f32.mrb[0].mxu0
        %v1123 = vadd.f32 %v780, %v1122
        %v1124 = vpop.f32.mrb[0].mxu0
        %1125 = vmatprep.mubr.f32.mxu0 0.0
        %v1126 = vand.u32 %v366, 4294901760
        %1127 = vmatmul.mubr.f32.gmra.mrb[0].mxu0 %v1126
        %v1128 = vpop.f32.mrb[0].mxu0
        %v1129 = vadd.f32 %v790, %v1128
        %v1130 = vpop.f32.mrb[0].mxu0
        %1131 = vmatprep.mubr.f32.mxu0 0.0
        %v1132 = vand.u32 %v369, 4294901760
        %1133 = vmatmul.mubr.f32.gmra.mrb[0].mxu0 %v1132
        %v1134 = vpop.f32.mrb[0].mxu0
        %v1135 = vadd.f32 %v800, %v1134
        %v1136 = vpop.f32.mrb[0].mxu0
        %1137 = vmatprep.mubr.f32.mxu0 0.0
        %v1138 = vand.u32 %v372, 4294901760
        %1139 = vmatmul.mubr.f32.gmra.mrb[0].mxu0 %v1138
        %v1140 = vpop.f32.mrb[0].mxu0
        %v1141 = vadd.f32 %v810, %v1140
        %v1142 = vpop.f32.mrb[0].mxu0
        %1143 = vmatprep.mubr.f32.mxu0 0.0
        %v1144 = vand.u32 %v375, 4294901760
        %1145 = vmatmul.mubr.f32.gmra.mrb[0].mxu0 %v1144
        %v1146 = vpop.f32.mrb[0].mxu0
        %v1147 = vadd.f32 %v820, %v1146
        %v1148 = vpop.f32.mrb[0].mxu0
        %1149 = vmatprep.mubr.f32.mxu0 0.0
        %v1150 = vand.u32 %v378, 4294901760
        %1151 = vmatmul.mubr.f32.gmra.mrb[0].mxu0 %v1150
        %v1152 = vpop.f32.mrb[0].mxu0
        %v1153 = vadd.f32 %v830, %v1152
        %v1154 = vpop.f32.mrb[0].mxu0
        %1155 = vmatprep.mubr.f32.mxu0 0.0
        %v1156 = vand.u32 %v381, 4294901760
        %1157 = vmatmul.mubr.f32.gmra.mrb[0].mxu0 %v1156
        %v1158 = vpop.f32.mrb[0].mxu0
        %v1159 = vadd.f32 %v840, %v1158
        %v1160 = vpop.f32.mrb[0].mxu0
        %1161 = vmatprep.mubr.f32.mxu0 0.0
        %v1162 = vand.u32 %v384, 4294901760
        %1163 = vmatmul.mubr.f32.gmra.mrb[0].mxu0 %v1162
        %v1164 = vpop.f32.mrb[0].mxu0
        %v1165 = vadd.f32 %v850, %v1164
        %v1166 = vpop.f32.mrb[0].mxu0
        %1167 = vdwg.mxu0
        %1168 = vmatprep.subr.mxu0 0.0
        %v1169 = vand.u32 %v263, 4294901760
        %v1170 = vsub.f32 %v263, %v1169
        %1171 = vmatpush1.msra.mxu0 %v1170
        %1172 = vmatprep.subr.mxu0 0.0
        %v1173 = vand.u32 %v264, 4294901760
        %v1174 = vsub.f32 %v264, %v1173
        %1175 = vmatpush1.msra.mxu0 %v1174
        %1176 = vmatprep.subr.mxu0 0.0
        %1177 = vmatpush1.msra.mxu0 0.0
        %1178 = vmatprep.subr.mxu0 0.0
        %1179 = vmatpush1.msra.mxu0 0.0
        %1180 = vmatprep.subr.mxu0 0.0
        %1181 = vmatpush1.msra.mxu0 0.0
        %1182 = vmatprep.subr.mxu0 0.0
        %1183 = vmatpush1.msra.mxu0 0.0
        %1184 = vmatprep.subr.mxu0 0.0
        %1185 = vmatpush1.msra.mxu0 0.0
        %1186 = vmatprep.subr.mxu0 0.0
        %1187 = vmatpush1.msra.mxu0 0.0
        %1188 = vmatprep.subr.mxu0 0.0
        %1189 = vmatpush1.msra.mxu0 0.0
        %1190 = vmatprep.subr.mxu0 0.0
        %1191 = vmatpush1.msra.mxu0 0.0
        %1192 = vmatprep.subr.mxu0 0.0
        %1193 = vmatpush1.msra.mxu0 0.0
        %1194 = vmatprep.subr.mxu0 0.0
        %1195 = vmatpush1.msra.mxu0 0.0
        %1196 = vmatprep.subr.mxu0 0.0
        %1197 = vmatpush1.msra.mxu0 0.0
        %1198 = vmatprep.subr.mxu0 0.0
        %1199 = vmatpush1.msra.mxu0 0.0
        %1200 = vmatprep.subr.mxu0 0.0
        %1201 = vmatpush1.msra.mxu0 0.0
        %1202 = vmatprep.subr.mxu0 0.0
        %1203 = vmatpush1.msra.mxu0 0.0
        %1204 = vmatprep.subr.mxu0 0.0
        %1205 = vmatpush1.msra.mxu0 0.0
        %1206 = vmatprep.subr.mxu0 0.0
        %1207 = vmatpush1.msra.mxu0 0.0
        %1208 = vmatprep.subr.mxu0 0.0
        %1209 = vmatpush1.msra.mxu0 0.0
        %1210 = vmatprep.subr.mxu0 0.0
        %1211 = vmatpush1.msra.mxu0 0.0
        %1212 = vmatprep.subr.mxu0 0.0
        %1213 = vmatpush1.msra.mxu0 0.0
        %1214 = vmatprep.subr.mxu0 0.0
        %1215 = vmatpush1.msra.mxu0 0.0
        %1216 = vmatprep.subr.mxu0 0.0
        %1217 = vmatpush1.msra.mxu0 0.0
        %1218 = vmatprep.subr.mxu0 0.0
        %1219 = vmatpush1.msra.mxu0 0.0
        %1220 = vmatprep.subr.mxu0 0.0
        %1221 = vmatpush1.msra.mxu0 0.0
        %1222 = vmatprep.subr.mxu0 0.0
        %1223 = vmatpush1.msra.mxu0 0.0
        %1224 = vmatprep.subr.mxu0 0.0
        %1225 = vmatpush1.msra.mxu0 0.0
        %1226 = vmatprep.subr.mxu0 0.0
        %1227 = vmatpush1.msra.mxu0 0.0
        %1228 = vmatprep.subr.mxu0 0.0
        %1229 = vmatpush1.msra.mxu0 0.0
        %1230 = vmatprep.subr.mxu0 0.0
        %1231 = vmatpush1.msra.mxu0 0.0
        %1232 = vmatprep.subr.mxu0 0.0
        %1233 = vmatpush1.msra.mxu0 0.0
        %1234 = vmatprep.subr.mxu0 0.0
        %1235 = vmatpush1.msra.mxu0 0.0
        %1236 = vmatprep.mubr.f32.mxu0 0.0
        %v1237 = vand.u32 %v267, 4294901760
        %v1238 = vsub.f32 %v267, %v1237
        %1239 = vmatmul.mubr.f32.gmra.mrb[0].mxu0 %v1238
        %v1240 = vpop.f32.mrb[0].mxu0
        %v1241 = vadd.f32 %v931, %v1240
        %v1242 = vpop.f32.mrb[0].mxu0
        %1243 = vmatprep.mubr.f32.mxu0 0.0
        %v1244 = vand.u32 %v270, 4294901760
        %v1245 = vsub.f32 %v270, %v1244
        %1246 = vmatmul.mubr.f32.gmra.mrb[0].mxu0 %v1245
        %v1247 = vpop.f32.mrb[0].mxu0
        %v1248 = vadd.f32 %v937, %v1247
        %v1249 = vpop.f32.mrb[0].mxu0
        %1250 = vmatprep.mubr.f32.mxu0 0.0
        %v1251 = vand.u32 %v273, 4294901760
        %v1252 = vsub.f32 %v273, %v1251
        %1253 = vmatmul.mubr.f32.gmra.mrb[0].mxu0 %v1252
        %v1254 = vpop.f32.mrb[0].mxu0
        %v1255 = vadd.f32 %v943, %v1254
        %v1256 = vpop.f32.mrb[0].mxu0
        %1257 = vmatprep.mubr.f32.mxu0 0.0
        %v1258 = vand.u32 %v276, 4294901760
        %v1259 = vsub.f32 %v276, %v1258
        %1260 = vmatmul.mubr.f32.gmra.mrb[0].mxu0 %v1259
        %v1261 = vpop.f32.mrb[0].mxu0
        %v1262 = vadd.f32 %v949, %v1261
        %v1263 = vpop.f32.mrb[0].mxu0
        %1264 = vmatprep.mubr.f32.mxu0 0.0
        %v1265 = vand.u32 %v279, 4294901760
        %v1266 = vsub.f32 %v279, %v1265
        %1267 = vmatmul.mubr.f32.gmra.mrb[0].mxu0 %v1266
        %v1268 = vpop.f32.mrb[0].mxu0
        %v1269 = vadd.f32 %v955, %v1268
        %v1270 = vpop.f32.mrb[0].mxu0
        %1271 = vmatprep.mubr.f32.mxu0 0.0
        %v1272 = vand.u32 %v282, 4294901760
        %v1273 = vsub.f32 %v282, %v1272
        %1274 = vmatmul.mubr.f32.gmra.mrb[0].mxu0 %v1273
        %v1275 = vpop.f32.mrb[0].mxu0
        %v1276 = vadd.f32 %v961, %v1275
        %v1277 = vpop.f32.mrb[0].mxu0
        %1278 = vmatprep.mubr.f32.mxu0 0.0
        %v1279 = vand.u32 %v285, 4294901760
        %v1280 = vsub.f32 %v285, %v1279
        %1281 = vmatmul.mubr.f32.gmra.mrb[0].mxu0 %v1280
        %v1282 = vpop.f32.mrb[0].mxu0
        %v1283 = vadd.f32 %v967, %v1282
        %v1284 = vpop.f32.mrb[0].mxu0
        %1285 = vmatprep.mubr.f32.mxu0 0.0
        %v1286 = vand.u32 %v288, 4294901760
        %v1287 = vsub.f32 %v288, %v1286
        %1288 = vmatmul.mubr.f32.gmra.mrb[0].mxu0 %v1287
        %v1289 = vpop.f32.mrb[0].mxu0
        %v1290 = vadd.f32 %v973, %v1289
        %v1291 = vpop.f32.mrb[0].mxu0
        %1292 = vmatprep.mubr.f32.mxu0 0.0
        %v1293 = vand.u32 %v291, 4294901760
        %v1294 = vsub.f32 %v291, %v1293
        %1295 = vmatmul.mubr.f32.gmra.mrb[0].mxu0 %v1294
        %v1296 = vpop.f32.mrb[0].mxu0
        %v1297 = vadd.f32 %v979, %v1296
        %v1298 = vpop.f32.mrb[0].mxu0
        %1299 = vmatprep.mubr.f32.mxu0 0.0
        %v1300 = vand.u32 %v294, 4294901760
        %v1301 = vsub.f32 %v294, %v1300
        %1302 = vmatmul.mubr.f32.gmra.mrb[0].mxu0 %v1301
        %v1303 = vpop.f32.mrb[0].mxu0
        %v1304 = vadd.f32 %v985, %v1303
        %v1305 = vpop.f32.mrb[0].mxu0
        %1306 = vmatprep.mubr.f32.mxu0 0.0
        %v1307 = vand.u32 %v297, 4294901760
        %v1308 = vsub.f32 %v297, %v1307
        %1309 = vmatmul.mubr.f32.gmra.mrb[0].mxu0 %v1308
        %v1310 = vpop.f32.mrb[0].mxu0
        %v1311 = vadd.f32 %v991, %v1310
        %v1312 = vpop.f32.mrb[0].mxu0
        %1313 = vmatprep.mubr.f32.mxu0 0.0
        %v1314 = vand.u32 %v300, 4294901760
        %v1315 = vsub.f32 %v300, %v1314
        %1316 = vmatmul.mubr.f32.gmra.mrb[0].mxu0 %v1315
        %v1317 = vpop.f32.mrb[0].mxu0
        %v1318 = vadd.f32 %v997, %v1317
        %v1319 = vpop.f32.mrb[0].mxu0
        %1320 = vmatprep.mubr.f32.mxu0 0.0
        %v1321 = vand.u32 %v303, 4294901760
        %v1322 = vsub.f32 %v303, %v1321
        %1323 = vmatmul.mubr.f32.gmra.mrb[0].mxu0 %v1322
        %v1324 = vpop.f32.mrb[0].mxu0
        %v1325 = vadd.f32 %v1003, %v1324
        %v1326 = vpop.f32.mrb[0].mxu0
        %1327 = vmatprep.mubr.f32.mxu0 0.0
        %v1328 = vand.u32 %v306, 4294901760
        %v1329 = vsub.f32 %v306, %v1328
        %1330 = vmatmul.mubr.f32.gmra.mrb[0].mxu0 %v1329
        %v1331 = vpop.f32.mrb[0].mxu0
        %v1332 = vadd.f32 %v1009, %v1331
        %v1333 = vpop.f32.mrb[0].mxu0
        %1334 = vmatprep.mubr.f32.mxu0 0.0
        %v1335 = vand.u32 %v309, 4294901760
        %v1336 = vsub.f32 %v309, %v1335
        %1337 = vmatmul.mubr.f32.gmra.mrb[0].mxu0 %v1336
        %v1338 = vpop.f32.mrb[0].mxu0
        %v1339 = vadd.f32 %v1015, %v1338
        %v1340 = vpop.f32.mrb[0].mxu0
        %1341 = vmatprep.mubr.f32.mxu0 0.0
        %v1342 = vand.u32 %v312, 4294901760
        %v1343 = vsub.f32 %v312, %v1342
        %1344 = vmatmul.mubr.f32.gmra.mrb[0].mxu0 %v1343
        %v1345 = vpop.f32.mrb[0].mxu0
        %v1346 = vadd.f32 %v1021, %v1345
        %v1347 = vpop.f32.mrb[0].mxu0
        %1348 = vmatprep.mubr.f32.mxu0 0.0
        %v1349 = vand.u32 %v315, 4294901760
        %v1350 = vsub.f32 %v315, %v1349
        %1351 = vmatmul.mubr.f32.gmra.mrb[0].mxu0 %v1350
        %v1352 = vpop.f32.mrb[0].mxu0
        %v1353 = vadd.f32 %v1027, %v1352
        %v1354 = vpop.f32.mrb[0].mxu0
        %1355 = vmatprep.mubr.f32.mxu0 0.0
        %v1356 = vand.u32 %v318, 4294901760
        %v1357 = vsub.f32 %v318, %v1356
        %1358 = vmatmul.mubr.f32.gmra.mrb[0].mxu0 %v1357
        %v1359 = vpop.f32.mrb[0].mxu0
        %v1360 = vadd.f32 %v1033, %v1359
        %v1361 = vpop.f32.mrb[0].mxu0
        %1362 = vmatprep.mubr.f32.mxu0 0.0
        %v1363 = vand.u32 %v321, 4294901760
        %v1364 = vsub.f32 %v321, %v1363
        %1365 = vmatmul.mubr.f32.gmra.mrb[0].mxu0 %v1364
        %v1366 = vpop.f32.mrb[0].mxu0
        %v1367 = vadd.f32 %v1039, %v1366
        %v1368 = vpop.f32.mrb[0].mxu0
        %1369 = vmatprep.mubr.f32.mxu0 0.0
        %v1370 = vand.u32 %v324, 4294901760
        %v1371 = vsub.f32 %v324, %v1370
        %1372 = vmatmul.mubr.f32.gmra.mrb[0].mxu0 %v1371
        %v1373 = vpop.f32.mrb[0].mxu0
        %v1374 = vadd.f32 %v1045, %v1373
        %v1375 = vpop.f32.mrb[0].mxu0
        %1376 = vmatprep.mubr.f32.mxu0 0.0
        %v1377 = vand.u32 %v327, 4294901760
        %v1378 = vsub.f32 %v327, %v1377
        %1379 = vmatmul.mubr.f32.gmra.mrb[0].mxu0 %v1378
        %v1380 = vpop.f32.mrb[0].mxu0
        %v1381 = vadd.f32 %v1051, %v1380
        %v1382 = vpop.f32.mrb[0].mxu0
        %1383 = vmatprep.mubr.f32.mxu0 0.0
        %v1384 = vand.u32 %v330, 4294901760
        %v1385 = vsub.f32 %v330, %v1384
        %1386 = vmatmul.mubr.f32.gmra.mrb[0].mxu0 %v1385
        %v1387 = vpop.f32.mrb[0].mxu0
        %v1388 = vadd.f32 %v1057, %v1387
        %v1389 = vpop.f32.mrb[0].mxu0
        %1390 = vmatprep.mubr.f32.mxu0 0.0
        %v1391 = vand.u32 %v333, 4294901760
        %v1392 = vsub.f32 %v333, %v1391
        %1393 = vmatmul.mubr.f32.gmra.mrb[0].mxu0 %v1392
        %v1394 = vpop.f32.mrb[0].mxu0
        %v1395 = vadd.f32 %v1063, %v1394
        %v1396 = vpop.f32.mrb[0].mxu0
        %1397 = vmatprep.mubr.f32.mxu0 0.0
        %v1398 = vand.u32 %v336, 4294901760
        %v1399 = vsub.f32 %v336, %v1398
        %1400 = vmatmul.mubr.f32.gmra.mrb[0].mxu0 %v1399
        %v1401 = vpop.f32.mrb[0].mxu0
        %v1402 = vadd.f32 %v1069, %v1401
        %v1403 = vpop.f32.mrb[0].mxu0
        %1404 = vmatprep.mubr.f32.mxu0 0.0
        %v1405 = vand.u32 %v339, 4294901760
        %v1406 = vsub.f32 %v339, %v1405
        %1407 = vmatmul.mubr.f32.gmra.mrb[0].mxu0 %v1406
        %v1408 = vpop.f32.mrb[0].mxu0
        %v1409 = vadd.f32 %v1075, %v1408
        %v1410 = vpop.f32.mrb[0].mxu0
        %1411 = vmatprep.mubr.f32.mxu0 0.0
        %v1412 = vand.u32 %v342, 4294901760
        %v1413 = vsub.f32 %v342, %v1412
        %1414 = vmatmul.mubr.f32.gmra.mrb[0].mxu0 %v1413
        %v1415 = vpop.f32.mrb[0].mxu0
        %v1416 = vadd.f32 %v1081, %v1415
        %v1417 = vpop.f32.mrb[0].mxu0
        %1418 = vmatprep.mubr.f32.mxu0 0.0
        %v1419 = vand.u32 %v345, 4294901760
        %v1420 = vsub.f32 %v345, %v1419
        %1421 = vmatmul.mubr.f32.gmra.mrb[0].mxu0 %v1420
        %v1422 = vpop.f32.mrb[0].mxu0
        %v1423 = vadd.f32 %v1087, %v1422
        %v1424 = vpop.f32.mrb[0].mxu0
        %1425 = vmatprep.mubr.f32.mxu0 0.0
        %v1426 = vand.u32 %v348, 4294901760
        %v1427 = vsub.f32 %v348, %v1426
        %1428 = vmatmul.mubr.f32.gmra.mrb[0].mxu0 %v1427
        %v1429 = vpop.f32.mrb[0].mxu0
        %v1430 = vadd.f32 %v1093, %v1429
        %v1431 = vpop.f32.mrb[0].mxu0
        %1432 = vmatprep.mubr.f32.mxu0 0.0
        %v1433 = vand.u32 %v351, 4294901760
        %v1434 = vsub.f32 %v351, %v1433
        %1435 = vmatmul.mubr.f32.gmra.mrb[0].mxu0 %v1434
        %v1436 = vpop.f32.mrb[0].mxu0
        %v1437 = vadd.f32 %v1099, %v1436
        %v1438 = vpop.f32.mrb[0].mxu0
        %1439 = vmatprep.mubr.f32.mxu0 0.0
        %v1440 = vand.u32 %v354, 4294901760
        %v1441 = vsub.f32 %v354, %v1440
        %1442 = vmatmul.mubr.f32.gmra.mrb[0].mxu0 %v1441
        %v1443 = vpop.f32.mrb[0].mxu0
        %v1444 = vadd.f32 %v1105, %v1443
        %v1445 = vpop.f32.mrb[0].mxu0
        %1446 = vmatprep.mubr.f32.mxu0 0.0
        %v1447 = vand.u32 %v357, 4294901760
        %v1448 = vsub.f32 %v357, %v1447
        %1449 = vmatmul.mubr.f32.gmra.mrb[0].mxu0 %v1448
        %v1450 = vpop.f32.mrb[0].mxu0
        %v1451 = vadd.f32 %v1111, %v1450
        %v1452 = vpop.f32.mrb[0].mxu0
        %1453 = vmatprep.mubr.f32.mxu0 0.0
        %v1454 = vand.u32 %v360, 4294901760
        %v1455 = vsub.f32 %v360, %v1454
        %1456 = vmatmul.mubr.f32.gmra.mrb[0].mxu0 %v1455
        %v1457 = vpop.f32.mrb[0].mxu0
        %v1458 = vadd.f32 %v1117, %v1457
        %v1459 = vpop.f32.mrb[0].mxu0
        %1460 = vmatprep.mubr.f32.mxu0 0.0
        %v1461 = vand.u32 %v363, 4294901760
        %v1462 = vsub.f32 %v363, %v1461
        %1463 = vmatmul.mubr.f32.gmra.mrb[0].mxu0 %v1462
        %v1464 = vpop.f32.mrb[0].mxu0
        %v1465 = vadd.f32 %v1123, %v1464
        %v1466 = vpop.f32.mrb[0].mxu0
        %1467 = vmatprep.mubr.f32.mxu0 0.0
        %v1468 = vand.u32 %v366, 4294901760
        %v1469 = vsub.f32 %v366, %v1468
        %1470 = vmatmul.mubr.f32.gmra.mrb[0].mxu0 %v1469
        %v1471 = vpop.f32.mrb[0].mxu0
        %v1472 = vadd.f32 %v1129, %v1471
        %v1473 = vpop.f32.mrb[0].mxu0
        %1474 = vmatprep.mubr.f32.mxu0 0.0
        %v1475 = vand.u32 %v369, 4294901760
        %v1476 = vsub.f32 %v369, %v1475
        %1477 = vmatmul.mubr.f32.gmra.mrb[0].mxu0 %v1476
        %v1478 = vpop.f32.mrb[0].mxu0
        %v1479 = vadd.f32 %v1135, %v1478
        %v1480 = vpop.f32.mrb[0].mxu0
        %1481 = vmatprep.mubr.f32.mxu0 0.0
        %v1482 = vand.u32 %v372, 4294901760
        %v1483 = vsub.f32 %v372, %v1482
        %1484 = vmatmul.mubr.f32.gmra.mrb[0].mxu0 %v1483
        %v1485 = vpop.f32.mrb[0].mxu0
        %v1486 = vadd.f32 %v1141, %v1485
        %v1487 = vpop.f32.mrb[0].mxu0
        %1488 = vmatprep.mubr.f32.mxu0 0.0
        %v1489 = vand.u32 %v375, 4294901760
        %v1490 = vsub.f32 %v375, %v1489
        %1491 = vmatmul.mubr.f32.gmra.mrb[0].mxu0 %v1490
        %v1492 = vpop.f32.mrb[0].mxu0
        %v1493 = vadd.f32 %v1147, %v1492
        %v1494 = vpop.f32.mrb[0].mxu0
        %1495 = vmatprep.mubr.f32.mxu0 0.0
        %v1496 = vand.u32 %v378, 4294901760
        %v1497 = vsub.f32 %v378, %v1496
        %1498 = vmatmul.mubr.f32.gmra.mrb[0].mxu0 %v1497
        %v1499 = vpop.f32.mrb[0].mxu0
        %v1500 = vadd.f32 %v1153, %v1499
        %v1501 = vpop.f32.mrb[0].mxu0
        %1502 = vmatprep.mubr.f32.mxu0 0.0
        %v1503 = vand.u32 %v381, 4294901760
        %v1504 = vsub.f32 %v381, %v1503
        %1505 = vmatmul.mubr.f32.gmra.mrb[0].mxu0 %v1504
        %v1506 = vpop.f32.mrb[0].mxu0
        %v1507 = vadd.f32 %v1159, %v1506
        %v1508 = vpop.f32.mrb[0].mxu0
        %1509 = vmatprep.mubr.f32.mxu0 0.0
        %v1510 = vand.u32 %v384, 4294901760
        %v1511 = vsub.f32 %v384, %v1510
        %1512 = vmatmul.mubr.f32.gmra.mrb[0].mxu0 %v1511
        %v1513 = vpop.f32.mrb[0].mxu0
        %v1514 = vadd.f32 %v1165, %v1513
        %v1515 = vpop.f32.mrb[0].mxu0
        %1516 = vdwg.mxu0
        %1517 = vmatprep.subr.mxu0 0.0
        %v1518 = vand.u32 %v263, 4294901760
        %1519 = vmatpush1.msra.mxu0 %v1518
        %1520 = vmatprep.subr.mxu0 0.0
        %v1521 = vand.u32 %v264, 4294901760
        %1522 = vmatpush1.msra.mxu0 %v1521
        %1523 = vmatprep.subr.mxu0 0.0
        %1524 = vmatpush1.msra.mxu0 0.0
        %1525 = vmatprep.subr.mxu0 0.0
        %1526 = vmatpush1.msra.mxu0 0.0
        %1527 = vmatprep.subr.mxu0 0.0
        %1528 = vmatpush1.msra.mxu0 0.0
        %1529 = vmatprep.subr.mxu0 0.0
        %1530 = vmatpush1.msra.mxu0 0.0
        %1531 = vmatprep.subr.mxu0 0.0
        %1532 = vmatpush1.msra.mxu0 0.0
        %1533 = vmatprep.subr.mxu0 0.0
        %1534 = vmatpush1.msra.mxu0 0.0
        %1535 = vmatprep.subr.mxu0 0.0
        %1536 = vmatpush1.msra.mxu0 0.0
        %1537 = vmatprep.subr.mxu0 0.0
        %1538 = vmatpush1.msra.mxu0 0.0
        %1539 = vmatprep.subr.mxu0 0.0
        %1540 = vmatpush1.msra.mxu0 0.0
        %1541 = vmatprep.subr.mxu0 0.0
        %1542 = vmatpush1.msra.mxu0 0.0
        %1543 = vmatprep.subr.mxu0 0.0
        %1544 = vmatpush1.msra.mxu0 0.0
        %1545 = vmatprep.subr.mxu0 0.0
        %1546 = vmatpush1.msra.mxu0 0.0
        %1547 = vmatprep.subr.mxu0 0.0
        %1548 = vmatpush1.msra.mxu0 0.0
        %1549 = vmatprep.subr.mxu0 0.0
        %1550 = vmatpush1.msra.mxu0 0.0
        %1551 = vmatprep.subr.mxu0 0.0
        %1552 = vmatpush1.msra.mxu0 0.0
        %1553 = vmatprep.subr.mxu0 0.0
        %1554 = vmatpush1.msra.mxu0 0.0
        %1555 = vmatprep.subr.mxu0 0.0
        %1556 = vmatpush1.msra.mxu0 0.0
        %1557 = vmatprep.subr.mxu0 0.0
        %1558 = vmatpush1.msra.mxu0 0.0
        %1559 = vmatprep.subr.mxu0 0.0
        %1560 = vmatpush1.msra.mxu0 0.0
        %1561 = vmatprep.subr.mxu0 0.0
        %1562 = vmatpush1.msra.mxu0 0.0
        %1563 = vmatprep.subr.mxu0 0.0
        %1564 = vmatpush1.msra.mxu0 0.0
        %1565 = vmatprep.subr.mxu0 0.0
        %1566 = vmatpush1.msra.mxu0 0.0
        %1567 = vmatprep.subr.mxu0 0.0
        %1568 = vmatpush1.msra.mxu0 0.0
        %1569 = vmatprep.subr.mxu0 0.0
        %1570 = vmatpush1.msra.mxu0 0.0
        %1571 = vmatprep.subr.mxu0 0.0
        %1572 = vmatpush1.msra.mxu0 0.0
        %1573 = vmatprep.subr.mxu0 0.0
        %1574 = vmatpush1.msra.mxu0 0.0
        %1575 = vmatprep.subr.mxu0 0.0
        %1576 = vmatpush1.msra.mxu0 0.0
        %1577 = vmatprep.subr.mxu0 0.0
        %1578 = vmatpush1.msra.mxu0 0.0
        %1579 = vmatprep.subr.mxu0 0.0
        %1580 = vmatpush1.msra.mxu0 0.0
        %1581 = vmatprep.subr.mxu0 0.0
        %1582 = vmatpush1.msra.mxu0 0.0
        %1583 = vmatprep.mubr.f32.mxu0 0.0
        %v1584 = vand.u32 %v267, 4294901760
        %v1585 = vsub.f32 %v267, %v1584
        %v1586 = vand.u32 %v1585, 4294901760
        %1587 = vmatmul.mubr.f32.gmra.mrb[0].mxu0 %v1586
        %v1588 = vpop.f32.mrb[0].mxu0
        %v1589 = vadd.f32 %v1241, %v1588
        %v1590 = vpop.f32.mrb[0].mxu0
        %1591 = vmatprep.mubr.f32.mxu0 0.0
        %v1592 = vand.u32 %v270, 4294901760
        %v1593 = vsub.f32 %v270, %v1592
        %v1594 = vand.u32 %v1593, 4294901760
        %1595 = vmatmul.mubr.f32.gmra.mrb[0].mxu0 %v1594
        %v1596 = vpop.f32.mrb[0].mxu0
        %v1597 = vadd.f32 %v1248, %v1596
        %v1598 = vpop.f32.mrb[0].mxu0
        %1599 = vmatprep.mubr.f32.mxu0 0.0
        %v1600 = vand.u32 %v273, 4294901760
        %v1601 = vsub.f32 %v273, %v1600
        %v1602 = vand.u32 %v1601, 4294901760
        %1603 = vmatmul.mubr.f32.gmra.mrb[0].mxu0 %v1602
        %v1604 = vpop.f32.mrb[0].mxu0
        %v1605 = vadd.f32 %v1255, %v1604
        %v1606 = vpop.f32.mrb[0].mxu0
        %1607 = vmatprep.mubr.f32.mxu0 0.0
        %v1608 = vand.u32 %v276, 4294901760
        %v1609 = vsub.f32 %v276, %v1608
        %v1610 = vand.u32 %v1609, 4294901760
        %1611 = vmatmul.mubr.f32.gmra.mrb[0].mxu0 %v1610
        %v1612 = vpop.f32.mrb[0].mxu0
        %v1613 = vadd.f32 %v1262, %v1612
        %v1614 = vpop.f32.mrb[0].mxu0
        %1615 = vmatprep.mubr.f32.mxu0 0.0
        %v1616 = vand.u32 %v279, 4294901760
        %v1617 = vsub.f32 %v279, %v1616
        %v1618 = vand.u32 %v1617, 4294901760
        %1619 = vmatmul.mubr.f32.gmra.mrb[0].mxu0 %v1618
        %v1620 = vpop.f32.mrb[0].mxu0
        %v1621 = vadd.f32 %v1269, %v1620
        %v1622 = vpop.f32.mrb[0].mxu0
        %1623 = vmatprep.mubr.f32.mxu0 0.0
        %v1624 = vand.u32 %v282, 4294901760
        %v1625 = vsub.f32 %v282, %v1624
        %v1626 = vand.u32 %v1625, 4294901760
        %1627 = vmatmul.mubr.f32.gmra.mrb[0].mxu0 %v1626
        %v1628 = vpop.f32.mrb[0].mxu0
        %v1629 = vadd.f32 %v1276, %v1628
        %v1630 = vpop.f32.mrb[0].mxu0
        %1631 = vmatprep.mubr.f32.mxu0 0.0
        %v1632 = vand.u32 %v285, 4294901760
        %v1633 = vsub.f32 %v285, %v1632
        %v1634 = vand.u32 %v1633, 4294901760
        %1635 = vmatmul.mubr.f32.gmra.mrb[0].mxu0 %v1634
        %v1636 = vpop.f32.mrb[0].mxu0
        %v1637 = vadd.f32 %v1283, %v1636
        %v1638 = vpop.f32.mrb[0].mxu0
        %1639 = vmatprep.mubr.f32.mxu0 0.0
        %v1640 = vand.u32 %v288, 4294901760
        %v1641 = vsub.f32 %v288, %v1640
        %v1642 = vand.u32 %v1641, 4294901760
        %1643 = vmatmul.mubr.f32.gmra.mrb[0].mxu0 %v1642
        %v1644 = vpop.f32.mrb[0].mxu0
        %v1645 = vadd.f32 %v1290, %v1644
        %v1646 = vpop.f32.mrb[0].mxu0
        %1647 = vmatprep.mubr.f32.mxu0 0.0
        %v1648 = vand.u32 %v291, 4294901760
        %v1649 = vsub.f32 %v291, %v1648
        %v1650 = vand.u32 %v1649, 4294901760
        %1651 = vmatmul.mubr.f32.gmra.mrb[0].mxu0 %v1650
        %v1652 = vpop.f32.mrb[0].mxu0
        %v1653 = vadd.f32 %v1297, %v1652
        %v1654 = vpop.f32.mrb[0].mxu0
        %1655 = vmatprep.mubr.f32.mxu0 0.0
        %v1656 = vand.u32 %v294, 4294901760
        %v1657 = vsub.f32 %v294, %v1656
        %v1658 = vand.u32 %v1657, 4294901760
        %1659 = vmatmul.mubr.f32.gmra.mrb[0].mxu0 %v1658
        %v1660 = vpop.f32.mrb[0].mxu0
        %v1661 = vadd.f32 %v1304, %v1660
        %v1662 = vpop.f32.mrb[0].mxu0
        %1663 = vmatprep.mubr.f32.mxu0 0.0
        %v1664 = vand.u32 %v297, 4294901760
        %v1665 = vsub.f32 %v297, %v1664
        %v1666 = vand.u32 %v1665, 4294901760
        %1667 = vmatmul.mubr.f32.gmra.mrb[0].mxu0 %v1666
        %v1668 = vpop.f32.mrb[0].mxu0
        %v1669 = vadd.f32 %v1311, %v1668
        %v1670 = vpop.f32.mrb[0].mxu0
        %1671 = vmatprep.mubr.f32.mxu0 0.0
        %v1672 = vand.u32 %v300, 4294901760
        %v1673 = vsub.f32 %v300, %v1672
        %v1674 = vand.u32 %v1673, 4294901760
        %1675 = vmatmul.mubr.f32.gmra.mrb[0].mxu0 %v1674
        %v1676 = vpop.f32.mrb[0].mxu0
        %v1677 = vadd.f32 %v1318, %v1676
        %v1678 = vpop.f32.mrb[0].mxu0
        %1679 = vmatprep.mubr.f32.mxu0 0.0
        %v1680 = vand.u32 %v303, 4294901760
        %v1681 = vsub.f32 %v303, %v1680
        %v1682 = vand.u32 %v1681, 4294901760
        %1683 = vmatmul.mubr.f32.gmra.mrb[0].mxu0 %v1682
        %v1684 = vpop.f32.mrb[0].mxu0
        %v1685 = vadd.f32 %v1325, %v1684
        %v1686 = vpop.f32.mrb[0].mxu0
        %1687 = vmatprep.mubr.f32.mxu0 0.0
        %v1688 = vand.u32 %v306, 4294901760
        %v1689 = vsub.f32 %v306, %v1688
        %v1690 = vand.u32 %v1689, 4294901760
        %1691 = vmatmul.mubr.f32.gmra.mrb[0].mxu0 %v1690
        %v1692 = vpop.f32.mrb[0].mxu0
        %v1693 = vadd.f32 %v1332, %v1692
        %v1694 = vpop.f32.mrb[0].mxu0
        %1695 = vmatprep.mubr.f32.mxu0 0.0
        %v1696 = vand.u32 %v309, 4294901760
        %v1697 = vsub.f32 %v309, %v1696
        %v1698 = vand.u32 %v1697, 4294901760
        %1699 = vmatmul.mubr.f32.gmra.mrb[0].mxu0 %v1698
        %v1700 = vpop.f32.mrb[0].mxu0
        %v1701 = vadd.f32 %v1339, %v1700
        %v1702 = vpop.f32.mrb[0].mxu0
        %1703 = vmatprep.mubr.f32.mxu0 0.0
        %v1704 = vand.u32 %v312, 4294901760
        %v1705 = vsub.f32 %v312, %v1704
        %v1706 = vand.u32 %v1705, 4294901760
        %1707 = vmatmul.mubr.f32.gmra.mrb[0].mxu0 %v1706
        %v1708 = vpop.f32.mrb[0].mxu0
        %v1709 = vadd.f32 %v1346, %v1708
        %v1710 = vpop.f32.mrb[0].mxu0
        %1711 = vmatprep.mubr.f32.mxu0 0.0
        %v1712 = vand.u32 %v315, 4294901760
        %v1713 = vsub.f32 %v315, %v1712
        %v1714 = vand.u32 %v1713, 4294901760
        %1715 = vmatmul.mubr.f32.gmra.mrb[0].mxu0 %v1714
        %v1716 = vpop.f32.mrb[0].mxu0
        %v1717 = vadd.f32 %v1353, %v1716
        %v1718 = vpop.f32.mrb[0].mxu0
        %1719 = vmatprep.mubr.f32.mxu0 0.0
        %v1720 = vand.u32 %v318, 4294901760
        %v1721 = vsub.f32 %v318, %v1720
        %v1722 = vand.u32 %v1721, 4294901760
        %1723 = vmatmul.mubr.f32.gmra.mrb[0].mxu0 %v1722
        %v1724 = vpop.f32.mrb[0].mxu0
        %v1725 = vadd.f32 %v1360, %v1724
        %v1726 = vpop.f32.mrb[0].mxu0
        %1727 = vmatprep.mubr.f32.mxu0 0.0
        %v1728 = vand.u32 %v321, 4294901760
        %v1729 = vsub.f32 %v321, %v1728
        %v1730 = vand.u32 %v1729, 4294901760
        %1731 = vmatmul.mubr.f32.gmra.mrb[0].mxu0 %v1730
        %v1732 = vpop.f32.mrb[0].mxu0
        %v1733 = vadd.f32 %v1367, %v1732
        %v1734 = vpop.f32.mrb[0].mxu0
        %1735 = vmatprep.mubr.f32.mxu0 0.0
        %v1736 = vand.u32 %v324, 4294901760
        %v1737 = vsub.f32 %v324, %v1736
        %v1738 = vand.u32 %v1737, 4294901760
        %1739 = vmatmul.mubr.f32.gmra.mrb[0].mxu0 %v1738
        %v1740 = vpop.f32.mrb[0].mxu0
        %v1741 = vadd.f32 %v1374, %v1740
        %v1742 = vpop.f32.mrb[0].mxu0
        %1743 = vmatprep.mubr.f32.mxu0 0.0
        %v1744 = vand.u32 %v327, 4294901760
        %v1745 = vsub.f32 %v327, %v1744
        %v1746 = vand.u32 %v1745, 4294901760
        %1747 = vmatmul.mubr.f32.gmra.mrb[0].mxu0 %v1746
        %v1748 = vpop.f32.mrb[0].mxu0
        %v1749 = vadd.f32 %v1381, %v1748
        %v1750 = vpop.f32.mrb[0].mxu0
        %1751 = vmatprep.mubr.f32.mxu0 0.0
        %v1752 = vand.u32 %v330, 4294901760
        %v1753 = vsub.f32 %v330, %v1752
        %v1754 = vand.u32 %v1753, 4294901760
        %1755 = vmatmul.mubr.f32.gmra.mrb[0].mxu0 %v1754
        %v1756 = vpop.f32.mrb[0].mxu0
        %v1757 = vadd.f32 %v1388, %v1756
        %v1758 = vpop.f32.mrb[0].mxu0
        %1759 = vmatprep.mubr.f32.mxu0 0.0
        %v1760 = vand.u32 %v333, 4294901760
        %v1761 = vsub.f32 %v333, %v1760
        %v1762 = vand.u32 %v1761, 4294901760
        %1763 = vmatmul.mubr.f32.gmra.mrb[0].mxu0 %v1762
        %v1764 = vpop.f32.mrb[0].mxu0
        %v1765 = vadd.f32 %v1395, %v1764
        %v1766 = vpop.f32.mrb[0].mxu0
        %1767 = vmatprep.mubr.f32.mxu0 0.0
        %v1768 = vand.u32 %v336, 4294901760
        %v1769 = vsub.f32 %v336, %v1768
        %v1770 = vand.u32 %v1769, 4294901760
        %1771 = vmatmul.mubr.f32.gmra.mrb[0].mxu0 %v1770
        %v1772 = vpop.f32.mrb[0].mxu0
        %v1773 = vadd.f32 %v1402, %v1772
        %v1774 = vpop.f32.mrb[0].mxu0
        %1775 = vmatprep.mubr.f32.mxu0 0.0
        %v1776 = vand.u32 %v339, 4294901760
        %v1777 = vsub.f32 %v339, %v1776
        %v1778 = vand.u32 %v1777, 4294901760
        %1779 = vmatmul.mubr.f32.gmra.mrb[0].mxu0 %v1778
        %v1780 = vpop.f32.mrb[0].mxu0
        %v1781 = vadd.f32 %v1409, %v1780
        %v1782 = vpop.f32.mrb[0].mxu0
        %1783 = vmatprep.mubr.f32.mxu0 0.0
        %v1784 = vand.u32 %v342, 4294901760
        %v1785 = vsub.f32 %v342, %v1784
        %v1786 = vand.u32 %v1785, 4294901760
        %1787 = vmatmul.mubr.f32.gmra.mrb[0].mxu0 %v1786
        %v1788 = vpop.f32.mrb[0].mxu0
        %v1789 = vadd.f32 %v1416, %v1788
        %v1790 = vpop.f32.mrb[0].mxu0
        %1791 = vmatprep.mubr.f32.mxu0 0.0
        %v1792 = vand.u32 %v345, 4294901760
        %v1793 = vsub.f32 %v345, %v1792
        %v1794 = vand.u32 %v1793, 4294901760
        %1795 = vmatmul.mubr.f32.gmra.mrb[0].mxu0 %v1794
        %v1796 = vpop.f32.mrb[0].mxu0
        %v1797 = vadd.f32 %v1423, %v1796
        %v1798 = vpop.f32.mrb[0].mxu0
        %1799 = vmatprep.mubr.f32.mxu0 0.0
        %v1800 = vand.u32 %v348, 4294901760
        %v1801 = vsub.f32 %v348, %v1800
        %v1802 = vand.u32 %v1801, 4294901760
        %1803 = vmatmul.mubr.f32.gmra.mrb[0].mxu0 %v1802
        %v1804 = vpop.f32.mrb[0].mxu0
        %v1805 = vadd.f32 %v1430, %v1804
        %v1806 = vpop.f32.mrb[0].mxu0
        %1807 = vmatprep.mubr.f32.mxu0 0.0
        %v1808 = vand.u32 %v351, 4294901760
        %v1809 = vsub.f32 %v351, %v1808
        %v1810 = vand.u32 %v1809, 4294901760
        %1811 = vmatmul.mubr.f32.gmra.mrb[0].mxu0 %v1810
        %v1812 = vpop.f32.mrb[0].mxu0
        %v1813 = vadd.f32 %v1437, %v1812
        %v1814 = vpop.f32.mrb[0].mxu0
        %1815 = vmatprep.mubr.f32.mxu0 0.0
        %v1816 = vand.u32 %v354, 4294901760
        %v1817 = vsub.f32 %v354, %v1816
        %v1818 = vand.u32 %v1817, 4294901760
        %1819 = vmatmul.mubr.f32.gmra.mrb[0].mxu0 %v1818
        %v1820 = vpop.f32.mrb[0].mxu0
        %v1821 = vadd.f32 %v1444, %v1820
        %v1822 = vpop.f32.mrb[0].mxu0
        %1823 = vmatprep.mubr.f32.mxu0 0.0
        %v1824 = vand.u32 %v357, 4294901760
        %v1825 = vsub.f32 %v357, %v1824
        %v1826 = vand.u32 %v1825, 4294901760
        %1827 = vmatmul.mubr.f32.gmra.mrb[0].mxu0 %v1826
        %v1828 = vpop.f32.mrb[0].mxu0
        %v1829 = vadd.f32 %v1451, %v1828
        %v1830 = vpop.f32.mrb[0].mxu0
        %1831 = vmatprep.mubr.f32.mxu0 0.0
        %v1832 = vand.u32 %v360, 4294901760
        %v1833 = vsub.f32 %v360, %v1832
        %v1834 = vand.u32 %v1833, 4294901760
        %1835 = vmatmul.mubr.f32.gmra.mrb[0].mxu0 %v1834
        %v1836 = vpop.f32.mrb[0].mxu0
        %v1837 = vadd.f32 %v1458, %v1836
        %v1838 = vpop.f32.mrb[0].mxu0
        %1839 = vmatprep.mubr.f32.mxu0 0.0
        %v1840 = vand.u32 %v363, 4294901760
        %v1841 = vsub.f32 %v363, %v1840
        %v1842 = vand.u32 %v1841, 4294901760
        %1843 = vmatmul.mubr.f32.gmra.mrb[0].mxu0 %v1842
        %v1844 = vpop.f32.mrb[0].mxu0
        %v1845 = vadd.f32 %v1465, %v1844
        %v1846 = vpop.f32.mrb[0].mxu0
        %1847 = vmatprep.mubr.f32.mxu0 0.0
        %v1848 = vand.u32 %v366, 4294901760
        %v1849 = vsub.f32 %v366, %v1848
        %v1850 = vand.u32 %v1849, 4294901760
        %1851 = vmatmul.mubr.f32.gmra.mrb[0].mxu0 %v1850
        %v1852 = vpop.f32.mrb[0].mxu0
        %v1853 = vadd.f32 %v1472, %v1852
        %v1854 = vpop.f32.mrb[0].mxu0
        %1855 = vmatprep.mubr.f32.mxu0 0.0
        %v1856 = vand.u32 %v369, 4294901760
        %v1857 = vsub.f32 %v369, %v1856
        %v1858 = vand.u32 %v1857, 4294901760
        %1859 = vmatmul.mubr.f32.gmra.mrb[0].mxu0 %v1858
        %v1860 = vpop.f32.mrb[0].mxu0
        %v1861 = vadd.f32 %v1479, %v1860
        %v1862 = vpop.f32.mrb[0].mxu0
        %1863 = vmatprep.mubr.f32.mxu0 0.0
        %v1864 = vand.u32 %v372, 4294901760
        %v1865 = vsub.f32 %v372, %v1864
        %v1866 = vand.u32 %v1865, 4294901760
        %1867 = vmatmul.mubr.f32.gmra.mrb[0].mxu0 %v1866
        %v1868 = vpop.f32.mrb[0].mxu0
        %v1869 = vadd.f32 %v1486, %v1868
        %v1870 = vpop.f32.mrb[0].mxu0
        %1871 = vmatprep.mubr.f32.mxu0 0.0
        %v1872 = vand.u32 %v375, 4294901760
        %v1873 = vsub.f32 %v375, %v1872
        %v1874 = vand.u32 %v1873, 4294901760
        %1875 = vmatmul.mubr.f32.gmra.mrb[0].mxu0 %v1874
        %v1876 = vpop.f32.mrb[0].mxu0
        %v1877 = vadd.f32 %v1493, %v1876
        %v1878 = vpop.f32.mrb[0].mxu0
        %1879 = vmatprep.mubr.f32.mxu0 0.0
        %v1880 = vand.u32 %v378, 4294901760
        %v1881 = vsub.f32 %v378, %v1880
        %v1882 = vand.u32 %v1881, 4294901760
        %1883 = vmatmul.mubr.f32.gmra.mrb[0].mxu0 %v1882
        %v1884 = vpop.f32.mrb[0].mxu0
        %v1885 = vadd.f32 %v1500, %v1884
        %v1886 = vpop.f32.mrb[0].mxu0
        %1887 = vmatprep.mubr.f32.mxu0 0.0
        %v1888 = vand.u32 %v381, 4294901760
        %v1889 = vsub.f32 %v381, %v1888
        %v1890 = vand.u32 %v1889, 4294901760
        %1891 = vmatmul.mubr.f32.gmra.mrb[0].mxu0 %v1890
        %v1892 = vpop.f32.mrb[0].mxu0
        %v1893 = vadd.f32 %v1507, %v1892
        %v1894 = vpop.f32.mrb[0].mxu0
        %1895 = vmatprep.mubr.f32.mxu0 0.0
        %v1896 = vand.u32 %v384, 4294901760
        %v1897 = vsub.f32 %v384, %v1896
        %v1898 = vand.u32 %v1897, 4294901760
        %1899 = vmatmul.mubr.f32.gmra.mrb[0].mxu0 %v1898
        %v1900 = vpop.f32.mrb[0].mxu0
        %v1901 = vadd.f32 %v1514, %v1900
        %v1902 = vpop.f32.mrb[0].mxu0
        %1903 = vdwg.mxu0
        %1904 = vmatprep.subr.mxu0 0.0
        %v1905 = vand.u32 %v263, 4294901760
        %v1906 = vsub.f32 %v263, %v1905
        %v1907 = vand.u32 %v1906, 4294901760
        %1908 = vmatpush1.msra.mxu0 %v1907
        %1909 = vmatprep.subr.mxu0 0.0
        %v1910 = vand.u32 %v264, 4294901760
        %v1911 = vsub.f32 %v264, %v1910
        %v1912 = vand.u32 %v1911, 4294901760
        %1913 = vmatpush1.msra.mxu0 %v1912
        %1914 = vmatprep.subr.mxu0 0.0
        %1915 = vmatpush1.msra.mxu0 0.0
        %1916 = vmatprep.subr.mxu0 0.0
        %1917 = vmatpush1.msra.mxu0 0.0
        %1918 = vmatprep.subr.mxu0 0.0
        %1919 = vmatpush1.msra.mxu0 0.0
        %1920 = vmatprep.subr.mxu0 0.0
        %1921 = vmatpush1.msra.mxu0 0.0
        %1922 = vmatprep.subr.mxu0 0.0
        %1923 = vmatpush1.msra.mxu0 0.0
        %1924 = vmatprep.subr.mxu0 0.0
        %1925 = vmatpush1.msra.mxu0 0.0
        %1926 = vmatprep.subr.mxu0 0.0
        %1927 = vmatpush1.msra.mxu0 0.0
        %1928 = vmatprep.subr.mxu0 0.0
        %1929 = vmatpush1.msra.mxu0 0.0
        %1930 = vmatprep.subr.mxu0 0.0
        %1931 = vmatpush1.msra.mxu0 0.0
        %1932 = vmatprep.subr.mxu0 0.0
        %1933 = vmatpush1.msra.mxu0 0.0
        %1934 = vmatprep.subr.mxu0 0.0
        %1935 = vmatpush1.msra.mxu0 0.0
        %1936 = vmatprep.subr.mxu0 0.0
        %1937 = vmatpush1.msra.mxu0 0.0
        %1938 = vmatprep.subr.mxu0 0.0
        %1939 = vmatpush1.msra.mxu0 0.0
        %1940 = vmatprep.subr.mxu0 0.0
        %1941 = vmatpush1.msra.mxu0 0.0
        %1942 = vmatprep.subr.mxu0 0.0
        %1943 = vmatpush1.msra.mxu0 0.0
        %1944 = vmatprep.subr.mxu0 0.0
        %1945 = vmatpush1.msra.mxu0 0.0
        %1946 = vmatprep.subr.mxu0 0.0
        %1947 = vmatpush1.msra.mxu0 0.0
        %1948 = vmatprep.subr.mxu0 0.0
        %1949 = vmatpush1.msra.mxu0 0.0
        %1950 = vmatprep.subr.mxu0 0.0
        %1951 = vmatpush1.msra.mxu0 0.0
        %1952 = vmatprep.subr.mxu0 0.0
        %1953 = vmatpush1.msra.mxu0 0.0
        %1954 = vmatprep.subr.mxu0 0.0
        %1955 = vmatpush1.msra.mxu0 0.0
        %1956 = vmatprep.subr.mxu0 0.0
        %1957 = vmatpush1.msra.mxu0 0.0
        %1958 = vmatprep.subr.mxu0 0.0
        %1959 = vmatpush1.msra.mxu0 0.0
        %1960 = vmatprep.subr.mxu0 0.0
        %1961 = vmatpush1.msra.mxu0 0.0
        %1962 = vmatprep.subr.mxu0 0.0
        %1963 = vmatpush1.msra.mxu0 0.0
        %1964 = vmatprep.subr.mxu0 0.0
        %1965 = vmatpush1.msra.mxu0 0.0
        %1966 = vmatprep.subr.mxu0 0.0
        %1967 = vmatpush1.msra.mxu0 0.0
        %1968 = vmatprep.subr.mxu0 0.0
        %1969 = vmatpush1.msra.mxu0 0.0
        %1970 = vmatprep.subr.mxu0 0.0
        %1971 = vmatpush1.msra.mxu0 0.0
        %1972 = vmatprep.subr.mxu0 0.0
        %1973 = vmatpush1.msra.mxu0 0.0
        %1974 = vmatprep.mubr.f32.mxu0 0.0
        %v1975 = vand.u32 %v267, 4294901760
        %1976 = vmatmul.mubr.f32.gmra.mrb[0].mxu0 %v1975
        %v1977 = vpop.f32.mrb[0].mxu0
        %v1978 = vadd.f32 %v1589, %v1977
        %v1979 = vpop.f32.mrb[0].mxu0
        %1980 = vmatprep.mubr.f32.mxu0 0.0
        %v1981 = vand.u32 %v270, 4294901760
        %1982 = vmatmul.mubr.f32.gmra.mrb[0].mxu0 %v1981
        %v1983 = vpop.f32.mrb[0].mxu0
        %v1984 = vadd.f32 %v1597, %v1983
        %v1985 = vpop.f32.mrb[0].mxu0
        %1986 = vmatprep.mubr.f32.mxu0 0.0
        %v1987 = vand.u32 %v273, 4294901760
        %1988 = vmatmul.mubr.f32.gmra.mrb[0].mxu0 %v1987
        %v1989 = vpop.f32.mrb[0].mxu0
        %v1990 = vadd.f32 %v1605, %v1989
        %v1991 = vpop.f32.mrb[0].mxu0
        %1992 = vmatprep.mubr.f32.mxu0 0.0
        %v1993 = vand.u32 %v276, 4294901760
        %1994 = vmatmul.mubr.f32.gmra.mrb[0].mxu0 %v1993
        %v1995 = vpop.f32.mrb[0].mxu0
        %v1996 = vadd.f32 %v1613, %v1995
        %v1997 = vpop.f32.mrb[0].mxu0
        %1998 = vmatprep.mubr.f32.mxu0 0.0
        %v1999 = vand.u32 %v279, 4294901760
        %2000 = vmatmul.mubr.f32.gmra.mrb[0].mxu0 %v1999
        %v2001 = vpop.f32.mrb[0].mxu0
        %v2002 = vadd.f32 %v1621, %v2001
        %v2003 = vpop.f32.mrb[0].mxu0
        %2004 = vmatprep.mubr.f32.mxu0 0.0
        %v2005 = vand.u32 %v282, 4294901760
        %2006 = vmatmul.mubr.f32.gmra.mrb[0].mxu0 %v2005
        %v2007 = vpop.f32.mrb[0].mxu0
        %v2008 = vadd.f32 %v1629, %v2007
        %v2009 = vpop.f32.mrb[0].mxu0
        %2010 = vmatprep.mubr.f32.mxu0 0.0
        %v2011 = vand.u32 %v285, 4294901760
        %2012 = vmatmul.mubr.f32.gmra.mrb[0].mxu0 %v2011
        %v2013 = vpop.f32.mrb[0].mxu0
        %v2014 = vadd.f32 %v1637, %v2013
        %v2015 = vpop.f32.mrb[0].mxu0
        %2016 = vmatprep.mubr.f32.mxu0 0.0
        %v2017 = vand.u32 %v288, 4294901760
        %2018 = vmatmul.mubr.f32.gmra.mrb[0].mxu0 %v2017
        %v2019 = vpop.f32.mrb[0].mxu0
        %v2020 = vadd.f32 %v1645, %v2019
        %v2021 = vpop.f32.mrb[0].mxu0
        %2022 = vmatprep.mubr.f32.mxu0 0.0
        %v2023 = vand.u32 %v291, 4294901760
        %2024 = vmatmul.mubr.f32.gmra.mrb[0].mxu0 %v2023
        %v2025 = vpop.f32.mrb[0].mxu0
        %v2026 = vadd.f32 %v1653, %v2025
        %v2027 = vpop.f32.mrb[0].mxu0
        %2028 = vmatprep.mubr.f32.mxu0 0.0
        %v2029 = vand.u32 %v294, 4294901760
        %2030 = vmatmul.mubr.f32.gmra.mrb[0].mxu0 %v2029
        %v2031 = vpop.f32.mrb[0].mxu0
        %v2032 = vadd.f32 %v1661, %v2031
        %v2033 = vpop.f32.mrb[0].mxu0
        %2034 = vmatprep.mubr.f32.mxu0 0.0
        %v2035 = vand.u32 %v297, 4294901760
        %2036 = vmatmul.mubr.f32.gmra.mrb[0].mxu0 %v2035
        %v2037 = vpop.f32.mrb[0].mxu0
        %v2038 = vadd.f32 %v1669, %v2037
        %v2039 = vpop.f32.mrb[0].mxu0
        %2040 = vmatprep.mubr.f32.mxu0 0.0
        %v2041 = vand.u32 %v300, 4294901760
        %2042 = vmatmul.mubr.f32.gmra.mrb[0].mxu0 %v2041
        %v2043 = vpop.f32.mrb[0].mxu0
        %v2044 = vadd.f32 %v1677, %v2043
        %v2045 = vpop.f32.mrb[0].mxu0
        %2046 = vmatprep.mubr.f32.mxu0 0.0
        %v2047 = vand.u32 %v303, 4294901760
        %2048 = vmatmul.mubr.f32.gmra.mrb[0].mxu0 %v2047
        %v2049 = vpop.f32.mrb[0].mxu0
        %v2050 = vadd.f32 %v1685, %v2049
        %v2051 = vpop.f32.mrb[0].mxu0
        %2052 = vmatprep.mubr.f32.mxu0 0.0
        %v2053 = vand.u32 %v306, 4294901760
        %2054 = vmatmul.mubr.f32.gmra.mrb[0].mxu0 %v2053
        %v2055 = vpop.f32.mrb[0].mxu0
        %v2056 = vadd.f32 %v1693, %v2055
        %v2057 = vpop.f32.mrb[0].mxu0
        %2058 = vmatprep.mubr.f32.mxu0 0.0
        %v2059 = vand.u32 %v309, 4294901760
        %2060 = vmatmul.mubr.f32.gmra.mrb[0].mxu0 %v2059
        %v2061 = vpop.f32.mrb[0].mxu0
        %v2062 = vadd.f32 %v1701, %v2061
        %v2063 = vpop.f32.mrb[0].mxu0
        %2064 = vmatprep.mubr.f32.mxu0 0.0
        %v2065 = vand.u32 %v312, 4294901760
        %2066 = vmatmul.mubr.f32.gmra.mrb[0].mxu0 %v2065
        %v2067 = vpop.f32.mrb[0].mxu0
        %v2068 = vadd.f32 %v1709, %v2067
        %v2069 = vpop.f32.mrb[0].mxu0
        %2070 = vmatprep.mubr.f32.mxu0 0.0
        %v2071 = vand.u32 %v315, 4294901760
        %2072 = vmatmul.mubr.f32.gmra.mrb[0].mxu0 %v2071
        %v2073 = vpop.f32.mrb[0].mxu0
        %v2074 = vadd.f32 %v1717, %v2073
        %v2075 = vpop.f32.mrb[0].mxu0
        %2076 = vmatprep.mubr.f32.mxu0 0.0
        %v2077 = vand.u32 %v318, 4294901760
        %2078 = vmatmul.mubr.f32.gmra.mrb[0].mxu0 %v2077
        %v2079 = vpop.f32.mrb[0].mxu0
        %v2080 = vadd.f32 %v1725, %v2079
        %v2081 = vpop.f32.mrb[0].mxu0
        %2082 = vmatprep.mubr.f32.mxu0 0.0
        %v2083 = vand.u32 %v321, 4294901760
        %2084 = vmatmul.mubr.f32.gmra.mrb[0].mxu0 %v2083
        %v2085 = vpop.f32.mrb[0].mxu0
        %v2086 = vadd.f32 %v1733, %v2085
        %v2087 = vpop.f32.mrb[0].mxu0
        %2088 = vmatprep.mubr.f32.mxu0 0.0
        %v2089 = vand.u32 %v324, 4294901760
        %2090 = vmatmul.mubr.f32.gmra.mrb[0].mxu0 %v2089
        %v2091 = vpop.f32.mrb[0].mxu0
        %v2092 = vadd.f32 %v1741, %v2091
        %v2093 = vpop.f32.mrb[0].mxu0
        %2094 = vmatprep.mubr.f32.mxu0 0.0
        %v2095 = vand.u32 %v327, 4294901760
        %2096 = vmatmul.mubr.f32.gmra.mrb[0].mxu0 %v2095
        %v2097 = vpop.f32.mrb[0].mxu0
        %v2098 = vadd.f32 %v1749, %v2097
        %v2099 = vpop.f32.mrb[0].mxu0
        %2100 = vmatprep.mubr.f32.mxu0 0.0
        %v2101 = vand.u32 %v330, 4294901760
        %2102 = vmatmul.mubr.f32.gmra.mrb[0].mxu0 %v2101
        %v2103 = vpop.f32.mrb[0].mxu0
        %v2104 = vadd.f32 %v1757, %v2103
        %v2105 = vpop.f32.mrb[0].mxu0
        %2106 = vmatprep.mubr.f32.mxu0 0.0
        %v2107 = vand.u32 %v333, 4294901760
        %2108 = vmatmul.mubr.f32.gmra.mrb[0].mxu0 %v2107
        %v2109 = vpop.f32.mrb[0].mxu0
        %v2110 = vadd.f32 %v1765, %v2109
        %v2111 = vpop.f32.mrb[0].mxu0
        %2112 = vmatprep.mubr.f32.mxu0 0.0
        %v2113 = vand.u32 %v336, 4294901760
        %2114 = vmatmul.mubr.f32.gmra.mrb[0].mxu0 %v2113
        %v2115 = vpop.f32.mrb[0].mxu0
        %v2116 = vadd.f32 %v1773, %v2115
        %v2117 = vpop.f32.mrb[0].mxu0
        %2118 = vmatprep.mubr.f32.mxu0 0.0
        %v2119 = vand.u32 %v339, 4294901760
        %2120 = vmatmul.mubr.f32.gmra.mrb[0].mxu0 %v2119
        %v2121 = vpop.f32.mrb[0].mxu0
        %v2122 = vadd.f32 %v1781, %v2121
        %v2123 = vpop.f32.mrb[0].mxu0
        %2124 = vmatprep.mubr.f32.mxu0 0.0
        %v2125 = vand.u32 %v342, 4294901760
        %2126 = vmatmul.mubr.f32.gmra.mrb[0].mxu0 %v2125
        %v2127 = vpop.f32.mrb[0].mxu0
        %v2128 = vadd.f32 %v1789, %v2127
        %v2129 = vpop.f32.mrb[0].mxu0
        %2130 = vmatprep.mubr.f32.mxu0 0.0
        %v2131 = vand.u32 %v345, 4294901760
        %2132 = vmatmul.mubr.f32.gmra.mrb[0].mxu0 %v2131
        %v2133 = vpop.f32.mrb[0].mxu0
        %v2134 = vadd.f32 %v1797, %v2133
        %v2135 = vpop.f32.mrb[0].mxu0
        %2136 = vmatprep.mubr.f32.mxu0 0.0
        %v2137 = vand.u32 %v348, 4294901760
        %2138 = vmatmul.mubr.f32.gmra.mrb[0].mxu0 %v2137
        %v2139 = vpop.f32.mrb[0].mxu0
        %v2140 = vadd.f32 %v1805, %v2139
        %v2141 = vpop.f32.mrb[0].mxu0
        %2142 = vmatprep.mubr.f32.mxu0 0.0
        %v2143 = vand.u32 %v351, 4294901760
        %2144 = vmatmul.mubr.f32.gmra.mrb[0].mxu0 %v2143
        %v2145 = vpop.f32.mrb[0].mxu0
        %v2146 = vadd.f32 %v1813, %v2145
        %v2147 = vpop.f32.mrb[0].mxu0
        %2148 = vmatprep.mubr.f32.mxu0 0.0
        %v2149 = vand.u32 %v354, 4294901760
        %2150 = vmatmul.mubr.f32.gmra.mrb[0].mxu0 %v2149
        %v2151 = vpop.f32.mrb[0].mxu0
        %v2152 = vadd.f32 %v1821, %v2151
        %v2153 = vpop.f32.mrb[0].mxu0
        %2154 = vmatprep.mubr.f32.mxu0 0.0
        %v2155 = vand.u32 %v357, 4294901760
        %2156 = vmatmul.mubr.f32.gmra.mrb[0].mxu0 %v2155
        %v2157 = vpop.f32.mrb[0].mxu0
        %v2158 = vadd.f32 %v1829, %v2157
        %v2159 = vpop.f32.mrb[0].mxu0
        %2160 = vmatprep.mubr.f32.mxu0 0.0
        %v2161 = vand.u32 %v360, 4294901760
        %2162 = vmatmul.mubr.f32.gmra.mrb[0].mxu0 %v2161
        %v2163 = vpop.f32.mrb[0].mxu0
        %v2164 = vadd.f32 %v1837, %v2163
        %v2165 = vpop.f32.mrb[0].mxu0
        %2166 = vmatprep.mubr.f32.mxu0 0.0
        %v2167 = vand.u32 %v363, 4294901760
        %2168 = vmatmul.mubr.f32.gmra.mrb[0].mxu0 %v2167
        %v2169 = vpop.f32.mrb[0].mxu0
        %v2170 = vadd.f32 %v1845, %v2169
        %v2171 = vpop.f32.mrb[0].mxu0
        %2172 = vmatprep.mubr.f32.mxu0 0.0
        %v2173 = vand.u32 %v366, 4294901760
        %2174 = vmatmul.mubr.f32.gmra.mrb[0].mxu0 %v2173
        %v2175 = vpop.f32.mrb[0].mxu0
        %v2176 = vadd.f32 %v1853, %v2175
        %v2177 = vpop.f32.mrb[0].mxu0
        %2178 = vmatprep.mubr.f32.mxu0 0.0
        %v2179 = vand.u32 %v369, 4294901760
        %2180 = vmatmul.mubr.f32.gmra.mrb[0].mxu0 %v2179
        %v2181 = vpop.f32.mrb[0].mxu0
        %v2182 = vadd.f32 %v1861, %v2181
        %v2183 = vpop.f32.mrb[0].mxu0
        %2184 = vmatprep.mubr.f32.mxu0 0.0
        %v2185 = vand.u32 %v372, 4294901760
        %2186 = vmatmul.mubr.f32.gmra.mrb[0].mxu0 %v2185
        %v2187 = vpop.f32.mrb[0].mxu0
        %v2188 = vadd.f32 %v1869, %v2187
        %v2189 = vpop.f32.mrb[0].mxu0
        %2190 = vmatprep.mubr.f32.mxu0 0.0
        %v2191 = vand.u32 %v375, 4294901760
        %2192 = vmatmul.mubr.f32.gmra.mrb[0].mxu0 %v2191
        %v2193 = vpop.f32.mrb[0].mxu0
        %v2194 = vadd.f32 %v1877, %v2193
        %v2195 = vpop.f32.mrb[0].mxu0
        %2196 = vmatprep.mubr.f32.mxu0 0.0
        %v2197 = vand.u32 %v378, 4294901760
        %2198 = vmatmul.mubr.f32.gmra.mrb[0].mxu0 %v2197
        %v2199 = vpop.f32.mrb[0].mxu0
        %v2200 = vadd.f32 %v1885, %v2199
        %v2201 = vpop.f32.mrb[0].mxu0
        %2202 = vmatprep.mubr.f32.mxu0 0.0
        %v2203 = vand.u32 %v381, 4294901760
        %2204 = vmatmul.mubr.f32.gmra.mrb[0].mxu0 %v2203
        %v2205 = vpop.f32.mrb[0].mxu0
        %v2206 = vadd.f32 %v1893, %v2205
        %v2207 = vpop.f32.mrb[0].mxu0
        %2208 = vmatprep.mubr.f32.mxu0 0.0
        %v2209 = vand.u32 %v384, 4294901760
        %2210 = vmatmul.mubr.f32.gmra.mrb[0].mxu0 %v2209
        %v2211 = vpop.f32.mrb[0].mxu0
        %v2212 = vadd.f32 %v1901, %v2211
        %v2213 = vpop.f32.mrb[0].mxu0
        %2214 = vdwg.mxu0
        %2215 = vmatprep.subr.mxu0 0.0
        %v2216 = vand.u32 %v263, 4294901760
        %2217 = vmatpush1.msra.mxu0 %v2216
        %2218 = vmatprep.subr.mxu0 0.0
        %v2219 = vand.u32 %v264, 4294901760
        %2220 = vmatpush1.msra.mxu0 %v2219
        %2221 = vmatprep.subr.mxu0 0.0
        %2222 = vmatpush1.msra.mxu0 0.0
        %2223 = vmatprep.subr.mxu0 0.0
        %2224 = vmatpush1.msra.mxu0 0.0
        %2225 = vmatprep.subr.mxu0 0.0
        %2226 = vmatpush1.msra.mxu0 0.0
        %2227 = vmatprep.subr.mxu0 0.0
        %2228 = vmatpush1.msra.mxu0 0.0
        %2229 = vmatprep.subr.mxu0 0.0
        %2230 = vmatpush1.msra.mxu0 0.0
        %2231 = vmatprep.subr.mxu0 0.0
        %2232 = vmatpush1.msra.mxu0 0.0
        %2233 = vmatprep.subr.mxu0 0.0
        %2234 = vmatpush1.msra.mxu0 0.0
        %2235 = vmatprep.subr.mxu0 0.0
        %2236 = vmatpush1.msra.mxu0 0.0
        %2237 = vmatprep.subr.mxu0 0.0
        %2238 = vmatpush1.msra.mxu0 0.0
        %2239 = vmatprep.subr.mxu0 0.0
        %2240 = vmatpush1.msra.mxu0 0.0
        %2241 = vmatprep.subr.mxu0 0.0
        %2242 = vmatpush1.msra.mxu0 0.0
        %2243 = vmatprep.subr.mxu0 0.0
        %2244 = vmatpush1.msra.mxu0 0.0
        %2245 = vmatprep.subr.mxu0 0.0
        %2246 = vmatpush1.msra.mxu0 0.0
        %2247 = vmatprep.subr.mxu0 0.0
        %2248 = vmatpush1.msra.mxu0 0.0
        %2249 = vmatprep.subr.mxu0 0.0
        %2250 = vmatpush1.msra.mxu0 0.0
        %2251 = vmatprep.subr.mxu0 0.0
        %2252 = vmatpush1.msra.mxu0 0.0
        %2253 = vmatprep.subr.mxu0 0.0
        %2254 = vmatpush1.msra.mxu0 0.0
        %2255 = vmatprep.subr.mxu0 0.0
        %2256 = vmatpush1.msra.mxu0 0.0
        %2257 = vmatprep.subr.mxu0 0.0
        %2258 = vmatpush1.msra.mxu0 0.0
        %2259 = vmatprep.subr.mxu0 0.0
        %2260 = vmatpush1.msra.mxu0 0.0
        %2261 = vmatprep.subr.mxu0 0.0
        %2262 = vmatpush1.msra.mxu0 0.0
        %2263 = vmatprep.subr.mxu0 0.0
        %2264 = vmatpush1.msra.mxu0 0.0
        %2265 = vmatprep.subr.mxu0 0.0
        %2266 = vmatpush1.msra.mxu0 0.0
        %2267 = vmatprep.subr.mxu0 0.0
        %2268 = vmatpush1.msra.mxu0 0.0
        %2269 = vmatprep.subr.mxu0 0.0
        %2270 = vmatpush1.msra.mxu0 0.0
        %2271 = vmatprep.subr.mxu0 0.0
        %2272 = vmatpush1.msra.mxu0 0.0
        %2273 = vmatprep.subr.mxu0 0.0
        %2274 = vmatpush1.msra.mxu0 0.0
        %2275 = vmatprep.subr.mxu0 0.0
        %2276 = vmatpush1.msra.mxu0 0.0
        %2277 = vmatprep.subr.mxu0 0.0
        %2278 = vmatpush1.msra.mxu0 0.0
        %2279 = vmatprep.subr.mxu0 0.0
        %2280 = vmatpush1.msra.mxu0 0.0
        %2281 = vmatprep.mubr.f32.mxu0 0.0
        %v2282 = vand.u32 %v267, 4294901760
        %2283 = vmatmul.mubr.f32.gmra.mrb[0].mxu0 %v2282
        %v2284 = vpop.f32.mrb[0].mxu0
        %v2285 = vadd.f32 %v1978, %v2284
        %v2286 = vpop.f32.mrb[0].mxu0
        %2287 = vmatprep.mubr.f32.mxu0 0.0
        %v2288 = vand.u32 %v270, 4294901760
        %2289 = vmatmul.mubr.f32.gmra.mrb[0].mxu0 %v2288
        %v2290 = vpop.f32.mrb[0].mxu0
        %v2291 = vadd.f32 %v1984, %v2290
        %v2292 = vpop.f32.mrb[0].mxu0
        %2293 = vmatprep.mubr.f32.mxu0 0.0
        %v2294 = vand.u32 %v273, 4294901760
        %2295 = vmatmul.mubr.f32.gmra.mrb[0].mxu0 %v2294
        %v2296 = vpop.f32.mrb[0].mxu0
        %v2297 = vadd.f32 %v1990, %v2296
        %v2298 = vpop.f32.mrb[0].mxu0
        %2299 = vmatprep.mubr.f32.mxu0 0.0
        %v2300 = vand.u32 %v276, 4294901760
        %2301 = vmatmul.mubr.f32.gmra.mrb[0].mxu0 %v2300
        %v2302 = vpop.f32.mrb[0].mxu0
        %v2303 = vadd.f32 %v1996, %v2302
        %v2304 = vpop.f32.mrb[0].mxu0
        %2305 = vmatprep.mubr.f32.mxu0 0.0
        %v2306 = vand.u32 %v279, 4294901760
        %2307 = vmatmul.mubr.f32.gmra.mrb[0].mxu0 %v2306
        %v2308 = vpop.f32.mrb[0].mxu0
        %v2309 = vadd.f32 %v2002, %v2308
        %v2310 = vpop.f32.mrb[0].mxu0
        %2311 = vmatprep.mubr.f32.mxu0 0.0
        %v2312 = vand.u32 %v282, 4294901760
        %2313 = vmatmul.mubr.f32.gmra.mrb[0].mxu0 %v2312
        %v2314 = vpop.f32.mrb[0].mxu0
        %v2315 = vadd.f32 %v2008, %v2314
        %v2316 = vpop.f32.mrb[0].mxu0
        %2317 = vmatprep.mubr.f32.mxu0 0.0
        %v2318 = vand.u32 %v285, 4294901760
        %2319 = vmatmul.mubr.f32.gmra.mrb[0].mxu0 %v2318
        %v2320 = vpop.f32.mrb[0].mxu0
        %v2321 = vadd.f32 %v2014, %v2320
        %v2322 = vpop.f32.mrb[0].mxu0
        %2323 = vmatprep.mubr.f32.mxu0 0.0
        %v2324 = vand.u32 %v288, 4294901760
        %2325 = vmatmul.mubr.f32.gmra.mrb[0].mxu0 %v2324
        %v2326 = vpop.f32.mrb[0].mxu0
        %v2327 = vadd.f32 %v2020, %v2326
        %v2328 = vpop.f32.mrb[0].mxu0
        %2329 = vmatprep.mubr.f32.mxu0 0.0
        %v2330 = vand.u32 %v291, 4294901760
        %2331 = vmatmul.mubr.f32.gmra.mrb[0].mxu0 %v2330
        %v2332 = vpop.f32.mrb[0].mxu0
        %v2333 = vadd.f32 %v2026, %v2332
        %v2334 = vpop.f32.mrb[0].mxu0
        %2335 = vmatprep.mubr.f32.mxu0 0.0
        %v2336 = vand.u32 %v294, 4294901760
        %2337 = vmatmul.mubr.f32.gmra.mrb[0].mxu0 %v2336
        %v2338 = vpop.f32.mrb[0].mxu0
        %v2339 = vadd.f32 %v2032, %v2338
        %v2340 = vpop.f32.mrb[0].mxu0
        %2341 = vmatprep.mubr.f32.mxu0 0.0
        %v2342 = vand.u32 %v297, 4294901760
        %2343 = vmatmul.mubr.f32.gmra.mrb[0].mxu0 %v2342
        %v2344 = vpop.f32.mrb[0].mxu0
        %v2345 = vadd.f32 %v2038, %v2344
        %v2346 = vpop.f32.mrb[0].mxu0
        %2347 = vmatprep.mubr.f32.mxu0 0.0
        %v2348 = vand.u32 %v300, 4294901760
        %2349 = vmatmul.mubr.f32.gmra.mrb[0].mxu0 %v2348
        %v2350 = vpop.f32.mrb[0].mxu0
        %v2351 = vadd.f32 %v2044, %v2350
        %v2352 = vpop.f32.mrb[0].mxu0
        %2353 = vmatprep.mubr.f32.mxu0 0.0
        %v2354 = vand.u32 %v303, 4294901760
        %2355 = vmatmul.mubr.f32.gmra.mrb[0].mxu0 %v2354
        %v2356 = vpop.f32.mrb[0].mxu0
        %v2357 = vadd.f32 %v2050, %v2356
        %v2358 = vpop.f32.mrb[0].mxu0
        %2359 = vmatprep.mubr.f32.mxu0 0.0
        %v2360 = vand.u32 %v306, 4294901760
        %2361 = vmatmul.mubr.f32.gmra.mrb[0].mxu0 %v2360
        %v2362 = vpop.f32.mrb[0].mxu0
        %v2363 = vadd.f32 %v2056, %v2362
        %v2364 = vpop.f32.mrb[0].mxu0
        %2365 = vmatprep.mubr.f32.mxu0 0.0
        %v2366 = vand.u32 %v309, 4294901760
        %2367 = vmatmul.mubr.f32.gmra.mrb[0].mxu0 %v2366
        %v2368 = vpop.f32.mrb[0].mxu0
        %v2369 = vadd.f32 %v2062, %v2368
        %v2370 = vpop.f32.mrb[0].mxu0
        %2371 = vmatprep.mubr.f32.mxu0 0.0
        %v2372 = vand.u32 %v312, 4294901760
        %2373 = vmatmul.mubr.f32.gmra.mrb[0].mxu0 %v2372
        %v2374 = vpop.f32.mrb[0].mxu0
        %v2375 = vadd.f32 %v2068, %v2374
        %v2376 = vpop.f32.mrb[0].mxu0
        %2377 = vmatprep.mubr.f32.mxu0 0.0
        %v2378 = vand.u32 %v315, 4294901760
        %2379 = vmatmul.mubr.f32.gmra.mrb[0].mxu0 %v2378
        %v2380 = vpop.f32.mrb[0].mxu0
        %v2381 = vadd.f32 %v2074, %v2380
        %v2382 = vpop.f32.mrb[0].mxu0
        %2383 = vmatprep.mubr.f32.mxu0 0.0
        %v2384 = vand.u32 %v318, 4294901760
        %2385 = vmatmul.mubr.f32.gmra.mrb[0].mxu0 %v2384
        %v2386 = vpop.f32.mrb[0].mxu0
        %v2387 = vadd.f32 %v2080, %v2386
        %v2388 = vpop.f32.mrb[0].mxu0
        %2389 = vmatprep.mubr.f32.mxu0 0.0
        %v2390 = vand.u32 %v321, 4294901760
        %2391 = vmatmul.mubr.f32.gmra.mrb[0].mxu0 %v2390
        %v2392 = vpop.f32.mrb[0].mxu0
        %v2393 = vadd.f32 %v2086, %v2392
        %v2394 = vpop.f32.mrb[0].mxu0
        %2395 = vmatprep.mubr.f32.mxu0 0.0
        %v2396 = vand.u32 %v324, 4294901760
        %2397 = vmatmul.mubr.f32.gmra.mrb[0].mxu0 %v2396
        %v2398 = vpop.f32.mrb[0].mxu0
        %v2399 = vadd.f32 %v2092, %v2398
        %v2400 = vpop.f32.mrb[0].mxu0
        %2401 = vmatprep.mubr.f32.mxu0 0.0
        %v2402 = vand.u32 %v327, 4294901760
        %2403 = vmatmul.mubr.f32.gmra.mrb[0].mxu0 %v2402
        %v2404 = vpop.f32.mrb[0].mxu0
        %v2405 = vadd.f32 %v2098, %v2404
        %v2406 = vpop.f32.mrb[0].mxu0
        %2407 = vmatprep.mubr.f32.mxu0 0.0
        %v2408 = vand.u32 %v330, 4294901760
        %2409 = vmatmul.mubr.f32.gmra.mrb[0].mxu0 %v2408
        %v2410 = vpop.f32.mrb[0].mxu0
        %v2411 = vadd.f32 %v2104, %v2410
        %v2412 = vpop.f32.mrb[0].mxu0
        %2413 = vmatprep.mubr.f32.mxu0 0.0
        %v2414 = vand.u32 %v333, 4294901760
        %2415 = vmatmul.mubr.f32.gmra.mrb[0].mxu0 %v2414
        %v2416 = vpop.f32.mrb[0].mxu0
        %v2417 = vadd.f32 %v2110, %v2416
        %v2418 = vpop.f32.mrb[0].mxu0
        %2419 = vmatprep.mubr.f32.mxu0 0.0
        %v2420 = vand.u32 %v336, 4294901760
        %2421 = vmatmul.mubr.f32.gmra.mrb[0].mxu0 %v2420
        %v2422 = vpop.f32.mrb[0].mxu0
        %v2423 = vadd.f32 %v2116, %v2422
        %v2424 = vpop.f32.mrb[0].mxu0
        %2425 = vmatprep.mubr.f32.mxu0 0.0
        %v2426 = vand.u32 %v339, 4294901760
        %2427 = vmatmul.mubr.f32.gmra.mrb[0].mxu0 %v2426
        %v2428 = vpop.f32.mrb[0].mxu0
        %v2429 = vadd.f32 %v2122, %v2428
        %v2430 = vpop.f32.mrb[0].mxu0
        %2431 = vmatprep.mubr.f32.mxu0 0.0
        %v2432 = vand.u32 %v342, 4294901760
        %2433 = vmatmul.mubr.f32.gmra.mrb[0].mxu0 %v2432
        %v2434 = vpop.f32.mrb[0].mxu0
        %v2435 = vadd.f32 %v2128, %v2434
        %v2436 = vpop.f32.mrb[0].mxu0
        %2437 = vmatprep.mubr.f32.mxu0 0.0
        %v2438 = vand.u32 %v345, 4294901760
        %2439 = vmatmul.mubr.f32.gmra.mrb[0].mxu0 %v2438
        %v2440 = vpop.f32.mrb[0].mxu0
        %v2441 = vadd.f32 %v2134, %v2440
        %v2442 = vpop.f32.mrb[0].mxu0
        %2443 = vmatprep.mubr.f32.mxu0 0.0
        %v2444 = vand.u32 %v348, 4294901760
        %2445 = vmatmul.mubr.f32.gmra.mrb[0].mxu0 %v2444
        %v2446 = vpop.f32.mrb[0].mxu0
        %v2447 = vadd.f32 %v2140, %v2446
        %v2448 = vpop.f32.mrb[0].mxu0
        %2449 = vmatprep.mubr.f32.mxu0 0.0
        %v2450 = vand.u32 %v351, 4294901760
        %2451 = vmatmul.mubr.f32.gmra.mrb[0].mxu0 %v2450
        %v2452 = vpop.f32.mrb[0].mxu0
        %v2453 = vadd.f32 %v2146, %v2452
        %v2454 = vpop.f32.mrb[0].mxu0
        %2455 = vmatprep.mubr.f32.mxu0 0.0
        %v2456 = vand.u32 %v354, 4294901760
        %2457 = vmatmul.mubr.f32.gmra.mrb[0].mxu0 %v2456
        %v2458 = vpop.f32.mrb[0].mxu0
        %v2459 = vadd.f32 %v2152, %v2458
        %v2460 = vpop.f32.mrb[0].mxu0
        %2461 = vmatprep.mubr.f32.mxu0 0.0
        %v2462 = vand.u32 %v357, 4294901760
        %2463 = vmatmul.mubr.f32.gmra.mrb[0].mxu0 %v2462
        %v2464 = vpop.f32.mrb[0].mxu0
        %v2465 = vadd.f32 %v2158, %v2464
        %v2466 = vpop.f32.mrb[0].mxu0
        %2467 = vmatprep.mubr.f32.mxu0 0.0
        %v2468 = vand.u32 %v360, 4294901760
        %2469 = vmatmul.mubr.f32.gmra.mrb[0].mxu0 %v2468
        %v2470 = vpop.f32.mrb[0].mxu0
        %v2471 = vadd.f32 %v2164, %v2470
        %v2472 = vpop.f32.mrb[0].mxu0
        %2473 = vmatprep.mubr.f32.mxu0 0.0
        %v2474 = vand.u32 %v363, 4294901760
        %2475 = vmatmul.mubr.f32.gmra.mrb[0].mxu0 %v2474
        %v2476 = vpop.f32.mrb[0].mxu0
        %v2477 = vadd.f32 %v2170, %v2476
        %v2478 = vpop.f32.mrb[0].mxu0
        %2479 = vmatprep.mubr.f32.mxu0 0.0
        %v2480 = vand.u32 %v366, 4294901760
        %2481 = vmatmul.mubr.f32.gmra.mrb[0].mxu0 %v2480
        %v2482 = vpop.f32.mrb[0].mxu0
        %v2483 = vadd.f32 %v2176, %v2482
        %v2484 = vpop.f32.mrb[0].mxu0
        %2485 = vmatprep.mubr.f32.mxu0 0.0
        %v2486 = vand.u32 %v369, 4294901760
        %2487 = vmatmul.mubr.f32.gmra.mrb[0].mxu0 %v2486
        %v2488 = vpop.f32.mrb[0].mxu0
        %v2489 = vadd.f32 %v2182, %v2488
        %v2490 = vpop.f32.mrb[0].mxu0
        %2491 = vmatprep.mubr.f32.mxu0 0.0
        %v2492 = vand.u32 %v372, 4294901760
        %2493 = vmatmul.mubr.f32.gmra.mrb[0].mxu0 %v2492
        %v2494 = vpop.f32.mrb[0].mxu0
        %v2495 = vadd.f32 %v2188, %v2494
        %v2496 = vpop.f32.mrb[0].mxu0
        %2497 = vmatprep.mubr.f32.mxu0 0.0
        %v2498 = vand.u32 %v375, 4294901760
        %2499 = vmatmul.mubr.f32.gmra.mrb[0].mxu0 %v2498
        %v2500 = vpop.f32.mrb[0].mxu0
        %v2501 = vadd.f32 %v2194, %v2500
        %v2502 = vpop.f32.mrb[0].mxu0
        %2503 = vmatprep.mubr.f32.mxu0 0.0
        %v2504 = vand.u32 %v378, 4294901760
        %2505 = vmatmul.mubr.f32.gmra.mrb[0].mxu0 %v2504
        %v2506 = vpop.f32.mrb[0].mxu0
        %v2507 = vadd.f32 %v2200, %v2506
        %v2508 = vpop.f32.mrb[0].mxu0
        %2509 = vmatprep.mubr.f32.mxu0 0.0
        %v2510 = vand.u32 %v381, 4294901760
        %2511 = vmatmul.mubr.f32.gmra.mrb[0].mxu0 %v2510
        %v2512 = vpop.f32.mrb[0].mxu0
        %v2513 = vadd.f32 %v2206, %v2512
        %v2514 = vpop.f32.mrb[0].mxu0
        %2515 = vmatprep.mubr.f32.mxu0 0.0
        %v2516 = vand.u32 %v384, 4294901760
        %2517 = vmatmul.mubr.f32.gmra.mrb[0].mxu0 %v2516
        %v2518 = vpop.f32.mrb[0].mxu0
        %v2519 = vadd.f32 %v2212, %v2518
        %v2520 = vpop.f32.mrb[0].mxu0
        %2521 = vdwg.mxu0
        %v2522 = vld [vmem:[%s221] sm:$0xff]
        %v2523 = vld [vmem:[%s221 + $0x8] sm:$0xff]
        %v2524 = vld [vmem:[%s221 + $0x10] sm:$0xff]
        %v2525 = vld [vmem:[%s221 + $0x18] sm:$0xff]
        %v2526 = vld [vmem:[%s221 + $0x20] sm:$0xff]
        %v2527 = vadd.f32 %v2285, %v2522
        %v2528 = vadd.f32 %v2291, %v2523
        %v2529 = vadd.f32 %v2297, %v2524
        %v2530 = vadd.f32 %v2303, %v2525
        %v2531 = vadd.f32 %v2309, %v2526
        %v2532 = vadd.f32 %v2315, %v2522
        %v2533 = vadd.f32 %v2321, %v2523
        %v2534 = vadd.f32 %v2327, %v2524
        %v2535 = vadd.f32 %v2333, %v2525
        %v2536 = vadd.f32 %v2339, %v2526
        %v2537 = vadd.f32 %v2345, %v2522
        %v2538 = vadd.f32 %v2351, %v2523
        %v2539 = vadd.f32 %v2357, %v2524
        %v2540 = vadd.f32 %v2363, %v2525
        %v2541 = vadd.f32 %v2369, %v2526
        %v2542 = vadd.f32 %v2375, %v2522
        %v2543 = vadd.f32 %v2381, %v2523
        %v2544 = vadd.f32 %v2387, %v2524
        %v2545 = vadd.f32 %v2393, %v2525
        %v2546 = vadd.f32 %v2399, %v2526
        %v2547 = vadd.f32 %v2405, %v2522
        %v2548 = vadd.f32 %v2411, %v2523
        %v2549 = vadd.f32 %v2417, %v2524
        %v2550 = vadd.f32 %v2423, %v2525
        %v2551 = vadd.f32 %v2429, %v2526
        %v2552 = vadd.f32 %v2435, %v2522
        %v2553 = vadd.f32 %v2441, %v2523
        %v2554 = vadd.f32 %v2447, %v2524
        %v2555 = vadd.f32 %v2453, %v2525
        %v2556 = vadd.f32 %v2459, %v2526
        %v2557 = vadd.f32 %v2465, %v2522
        %v2558 = vadd.f32 %v2471, %v2523
        %v2559 = vadd.f32 %v2477, %v2524
        %v2560 = vadd.f32 %v2483, %v2525
        %v2561 = vadd.f32 %v2489, %v2526
        %v2562 = vadd.f32 %v2495, %v2522
        %v2563 = vadd.f32 %v2501, %v2523
        %v2564 = vadd.f32 %v2507, %v2524
        %v2565 = vadd.f32 %v2513, %v2525
        %v2566 = vadd.f32 %v2519, %v2526
        %2567 = vst [vmem:[%s206] sm:$0xff] %v2527
        %2568 = vst [vmem:[%s206 + $0x8] sm:$0xff] %v2528
        %2569 = vst [vmem:[%s206 + $0x10] sm:$0xff] %v2529
        %2570 = vst [vmem:[%s206 + $0x18] sm:$0xff] %v2530
        %2571 = vst [vmem:[%s206 + $0x20] sm:$0xff] %v2531
        %2572 = vst [vmem:[%s206 + $0x28] sm:$0xff] %v2532
        %2573 = vst [vmem:[%s206 + $0x30] sm:$0xff] %v2533
        %2574 = vst [vmem:[%s206 + $0x38] sm:$0xff] %v2534
        %2575 = vst [vmem:[%s206 + $0x40] sm:$0xff] %v2535
        %2576 = vst [vmem:[%s206 + $0x48] sm:$0xff] %v2536
        %2577 = vst [vmem:[%s206 + $0x50] sm:$0xff] %v2537
        %2578 = vst [vmem:[%s206 + $0x58] sm:$0xff] %v2538
        %2579 = vst [vmem:[%s206 + $0x60] sm:$0xff] %v2539
        %2580 = vst [vmem:[%s206 + $0x68] sm:$0xff] %v2540
        %2581 = vst [vmem:[%s206 + $0x70] sm:$0xff] %v2541
        %2582 = vst [vmem:[%s206 + $0x78] sm:$0xff] %v2542
        %2583 = vst [vmem:[%s206 + $0x80] sm:$0xff] %v2543
        %2584 = vst [vmem:[%s206 + $0x88] sm:$0xff] %v2544
        %2585 = vst [vmem:[%s206 + $0x90] sm:$0xff] %v2545
        %2586 = vst [vmem:[%s206 + $0x98] sm:$0xff] %v2546
        %2587 = vst [vmem:[%s206 + $0xa0] sm:$0xff] %v2547
        %2588 = vst [vmem:[%s206 + $0xa8] sm:$0xff] %v2548
        %2589 = vst [vmem:[%s206 + $0xb0] sm:$0xff] %v2549
        %2590 = vst [vmem:[%s206 + $0xb8] sm:$0xff] %v2550
        %2591 = vst [vmem:[%s206 + $0xc0] sm:$0xff] %v2551
        %2592 = vst [vmem:[%s206 + $0xc8] sm:$0xff] %v2552
        %2593 = vst [vmem:[%s206 + $0xd0] sm:$0xff] %v2553
        %2594 = vst [vmem:[%s206 + $0xd8] sm:$0xff] %v2554
        %2595 = vst [vmem:[%s206 + $0xe0] sm:$0xff] %v2555
        %2596 = vst [vmem:[%s206 + $0xe8] sm:$0xff] %v2556
        %2597 = vst [vmem:[%s206 + $0xf0] sm:$0xff] %v2557
        %2598 = vst [vmem:[%s206 + $0xf8] sm:$0xff] %v2558
        %2599 = vst [vmem:[%s206 + $0x100] sm:$0xff] %v2559
        %2600 = vst [vmem:[%s206 + $0x108] sm:$0xff] %v2560
        %2601 = vst [vmem:[%s206 + $0x110] sm:$0xff] %v2561
        %2602 = vst [vmem:[%s206 + $0x118] sm:$0xff] %v2562
        %2603 = vst [vmem:[%s206 + $0x120] sm:$0xff] %v2563
        %2604 = vst [vmem:[%s206 + $0x128] sm:$0xff] %v2564
        %2605 = vst [vmem:[%s206 + $0x130] sm:$0xff] %v2565
        %2606 = vst [vmem:[%s206 + $0x138] sm:$0xff] %v2566
        %s2607 = sand.u32 %s117, 1
        %s2608 = scalar_lea.sflag [#allocation3], %s2607
        %s2609 = sand.u32 %s117, 1
        %s2610 = smul.addr %s2609, 320
        %s2611 = scalar_lea.vmem [#allocation2], %s2610
        // Predicated region
        $region33: #{tpu_custom_call.1} parent=31 // pred_check
          %p2612 = pneg %p127
        $region34: #{tpu_custom_call.1} parent=31 // pred_check_branch
          %2614 = sbr.rel (%p2612) target = $region36
        $region35: #{tpu_custom_call.1} parent=31 // pred_region
          %s2615 = smul.u32 8, %s21
          %s2617 = ssub.s32 5120, 5120
          %2618 = vsyncadd %s2608, %s2617
          %s2619 = smul.addr %s2615, 5
          %s2620 = sadd.s32 %s22, %s2619
          %s2621 = smul.addr %s2620, 128
          %s2622 = scalar_lea.hbm %s3, %s2621
          %s2623 = sshll.u32 %s2611, 4
          %s2624 = int_to_ptr.vmem [resolvable:$true] %s2623
          %2629 = dma.vmem_to_hbm [thread:$0]  %s2624, 5120, %s2622, %s2608, 128, 128, 8
        $region36: #{tpu_custom_call.1} parent=31 // pred_fallthru
          _
      $region32: #{tpu_custom_call.1} parent=5 // pred_fallthru
        _
      %p2630 = scmp.le.s32.totalorder 2, %s12
      // Predicated region
      $region37: #{tpu_custom_call.1} parent=5 // pred_check
        %p2631 = pneg %p2630
      $region38: #{tpu_custom_call.1} parent=5 // pred_check_branch
        %2633 = sbr.rel (%p2631) target = $region40
      $region39: #{tpu_custom_call.1} parent=5 // pred_region
        %s2634 = ssub.s32 %s12, 2
        // Predicated region
        $region41: #{tpu_custom_call.1} parent=39 // pred_check
          %p2635 = pneg %p133
        $region42: #{tpu_custom_call.1} parent=39 // pred_check_branch
          %2637 = sbr.rel (%p2635) target = $region44
        $region43: #{tpu_custom_call.1} parent=39 // pred_region
          %s2638 = sand.u32 %s118, 1
          %s2639 = scalar_lea.sflag [#allocation3], %s2638
          %s2640 = sand.u32 %s118, 1
          %s2641 = smul.addr %s2640, 320
          %s2642 = scalar_lea.vmem [#allocation2], %s2641
          %2643 = dma.done %s2639, 5120
        $region44: #{tpu_custom_call.1} parent=39 // pred_fallthru
          _
      $region40: #{tpu_custom_call.1} parent=5 // pred_fallthru
        _
    $region6: #{tpu_custom_call.1} parent=1 // loop_footer
      %s16 = sadd.s32 1, %s12
    $region7: #{tpu_custom_call.1} parent=1 // loop_footer_branch
      %11 = sbr.rel target = $region3
    $region8: #{tpu_custom_call.1} parent=1 // loop_exit
      _
    %2644 = vsyncpa [#allocation3], 1
    %s2645 = scalar_lea.sflag [#allocation3], 1
    %2646 = vsyncpa %s2645, 1

</llo_original>
